<compile_context>
chip_gen: v7x
topology: tpu7x:2x2x1
jax: 0.10.0
libtpu: 0.0.40
codegen_flags: <defaults>
</compile_context>

<pallas_src>
import math
import functools

import jax
import jax.numpy as jnp
from jax.experimental import pallas as pl
from jax.experimental.pallas import tpu as pltpu

HIDDEN = 768
MID = 512
DOMAIN_CLASSES = 2
CLASSIFIER_CLASSES = 3
OUT_PAD = 128               # each head's tiny class dim padded to one lane-width
FUSED_MID = 2 * MID         # 1024 (both heads' hidden, concatenated on lanes)
FUSED_OUT = 2 * OUT_PAD     # 256  (both heads' padded outputs, concatenated)
LN_EPS = 1e-5               # torch.nn.LayerNorm default


def _round_up(x, m):
    return (x + m - 1) // m * m


def _gelu_exact(x):
    # PyTorch nn.GELU() default ('none') = exact erf-based GELU.
    return 0.5 * x * (1.0 + jax.lax.erf(x * (1.0 / math.sqrt(2.0))))


def _layernorm(h, gamma, beta):
    mu = jnp.mean(h, axis=-1, keepdims=True)
    d = h - mu
    var = jnp.mean(d * d, axis=-1, keepdims=True)   # biased, like torch
    return d * jax.lax.rsqrt(var + LN_EPS) * gamma + beta


def dann_heads_kernel(x_ref, w1_ref, b1_ref, g_ref, beta_ref, w2_ref, b2_ref,
                      out_ref):
    x = x_ref[...]
    # Fused first linear for both heads: (TB,768) @ (768,1024) — one MXU pass.
    h = jnp.dot(x, w1_ref[...], preferred_element_type=jnp.float32) + b1_ref[...]
    h = _gelu_exact(h)
    # Per-head LayerNorm over the two 512-lane halves (512 = 4*128, lane-aligned),
    # then re-fuse into a lane-dense (TB, 1024) slab.
    hn = jnp.concatenate(
        [_layernorm(h[:, :MID], g_ref[:, :MID], beta_ref[:, :MID]),
         _layernorm(h[:, MID:], g_ref[:, MID:], beta_ref[:, MID:])],
        axis=-1)
    # Fused block-diagonal second linear: (TB,1024) @ (1024,256) — one MXU pass,
    # one lane-dense 256-wide output store.
    o = jnp.dot(hn, w2_ref[...], preferred_element_type=jnp.float32) + b2_ref[...]
    out_ref[...] = _gelu_exact(o)


def _fuse_params(params):
    w1 = jnp.concatenate([params["d_w1"], params["c_w1"]], axis=1)     # (768,1024)
    b1 = jnp.concatenate([params["d_b1"], params["c_b1"]], axis=1)     # (1,1024)
    g = jnp.concatenate([params["d_gamma"], params["c_gamma"]], axis=1)
    beta = jnp.concatenate([params["d_beta"], params["c_beta"]], axis=1)
    zeros = jnp.zeros((MID, OUT_PAD), jnp.float32)
    w2 = jnp.concatenate(                                              # (1024,256)
        [jnp.concatenate([params["d_w2"], zeros], axis=1),
         jnp.concatenate([zeros, params["c_w2"]], axis=1)], axis=0)
    b2 = jnp.concatenate([params["d_b2"], params["c_b2"]], axis=1)     # (1,256)
    return w1, b1, g, beta, w2, b2


@functools.partial(jax.jit, static_argnames=("tb",))
def dann_forward(pooler_output, params, tb=256):
    B = pooler_output.shape[0]
    # TB: multiple of 8, capped so small batches use one grid step.
    TB = min(tb, max(8, _round_up(B, 8)))
    B_pad = _round_up(B, TB)
    x = pooler_output
    if B_pad != B:
        x = jnp.pad(x, ((0, B_pad - B), (0, 0)))   # padded rows sliced off below

    w1, b1, g, beta, w2, b2 = _fuse_params(params)

    tiled = lambda i: (i, 0)        # batch-tiled arrays
    resident = lambda i: (0, 0)     # weights/biases: same block every step

    cost = pl.CostEstimate(
        flops=2 * B_pad * (HIDDEN * FUSED_MID + FUSED_MID * FUSED_OUT),
        transcendentals=B_pad * (FUSED_MID + FUSED_OUT),
        bytes_accessed=4 * (B_pad * HIDDEN + HIDDEN * FUSED_MID
                            + FUSED_MID * FUSED_OUT + B_pad * FUSED_OUT
                            + 3 * FUSED_MID + FUSED_OUT),
    )

    out_pad = pl.pallas_call(
        dann_heads_kernel,
        out_shape=jax.ShapeDtypeStruct((B_pad, FUSED_OUT), jnp.float32),
        grid=(B_pad // TB,),
        in_specs=[
            pl.BlockSpec((TB, HIDDEN), tiled),           # x tile
            pl.BlockSpec((HIDDEN, FUSED_MID), resident),  # fused W1
            pl.BlockSpec((1, FUSED_MID), resident),       # fused b1
            pl.BlockSpec((1, FUSED_MID), resident),       # fused gamma
            pl.BlockSpec((1, FUSED_MID), resident),       # fused beta
            pl.BlockSpec((FUSED_MID, FUSED_OUT), resident),  # block-diag W2
            pl.BlockSpec((1, FUSED_OUT), resident),       # fused b2
        ],
        out_specs=pl.BlockSpec((TB, FUSED_OUT), tiled),
        compiler_params=pltpu.CompilerParams(
            dimension_semantics=("parallel",),            # v7x dual-TC sharding
            vmem_limit_bytes=48 * 1024 * 1024),           # headroom for v5e/v7x
        cost_estimate=cost,
    )(x, w1, b1, g, beta, w2, b2)

    domain = out_pad[:B, :DOMAIN_CLASSES]
    classifier = out_pad[:B, OUT_PAD:OUT_PAD + CLASSIFIER_CLASSES]
    return {"domain": domain, "classifier": classifier, "logits": classifier}


def init_params(key):
    # _init_weights: Linear weights ~ N(0, 0.01), biases = 0; LayerNorm stays
    # at its default (gamma=1, beta=0).
    ks = jax.random.split(key, 4)

    def lin(k, fan_in, fan_out, pad_to=None):
        w = 0.01 * jax.random.normal(k, (fan_in, fan_out), jnp.float32)
        if pad_to is not None and pad_to > fan_out:
            w = jnp.pad(w, ((0, 0), (0, pad_to - fan_out)))
        b = jnp.zeros((1, w.shape[1]), jnp.float32)
        return w, b

    d_w1, d_b1 = lin(ks[0], HIDDEN, MID)
    d_w2, d_b2 = lin(ks[1], MID, DOMAIN_CLASSES, pad_to=OUT_PAD)
    c_w1, c_b1 = lin(ks[2], HIDDEN, MID)
    c_w2, c_b2 = lin(ks[3], MID, CLASSIFIER_CLASSES, pad_to=OUT_PAD)

    ones = jnp.ones((1, MID), jnp.float32)
    zeros = jnp.zeros((1, MID), jnp.float32)
    return {
        "d_w1": d_w1, "d_b1": d_b1, "d_gamma": ones, "d_beta": zeros,
        "d_w2": d_w2, "d_b2": d_b2,
        "c_w1": c_w1, "c_b1": c_b1, "c_gamma": ones, "c_beta": zeros,
        "c_w2": c_w2, "c_b2": c_b2,
    }


def reference_forward(pooler_output, params):
    def head(x, w1, b1, g, beta, w2, b2, n_out):
        h = _gelu_exact(x @ w1 + b1)
        mu = h.mean(-1, keepdims=True)
        var = ((h - mu) ** 2).mean(-1, keepdims=True)
        h = (h - mu) / jnp.sqrt(var + LN_EPS) * g + beta
        return _gelu_exact(h @ w2 + b2)[:, :n_out]

    dom = head(pooler_output, params["d_w1"], params["d_b1"], params["d_gamma"],
               params["d_beta"], params["d_w2"], params["d_b2"], DOMAIN_CLASSES)
    cls = head(pooler_output, params["c_w1"], params["c_b1"], params["c_gamma"],
               params["c_beta"], params["c_w2"], params["c_b2"],
               CLASSIFIER_CLASSES)
    return dom, cls


if __name__ == "__main__":
    key = jax.random.PRNGKey(0)
    k_param, k_x1, k_x2 = jax.random.split(key, 3)
    params = init_params(k_param)

    # Case 1: small batch (single grid step).
    B1 = 8
    x1 = jax.random.normal(k_x1, (B1, HIDDEN), jnp.float32)
    out1 = dann_forward(x1, params)
    jax.block_until_ready(out1)
    dom_ref1, cls_ref1 = reference_forward(x1, params)
    assert out1["domain"].shape == (B1, DOMAIN_CLASSES)
    assert out1["classifier"].shape == (B1, CLASSIFIER_CLASSES)
    assert jnp.allclose(out1["domain"], dom_ref1, atol=1e-5, rtol=1e-5)
    assert jnp.allclose(out1["classifier"], cls_ref1, atol=1e-5, rtol=1e-5)
    assert jnp.array_equal(out1["logits"], out1["classifier"])

    # Case 2: batch not a multiple of the tile -> exercises the grid + padding.
    B2 = 40
    x2 = jax.random.normal(k_x2, (B2, HIDDEN), jnp.float32)
    out2 = dann_forward(x2, params, tb=16)   # grid of 3 steps, last tile padded
    jax.block_until_ready(out2)
    dom_ref2, cls_ref2 = reference_forward(x2, params)
    assert out2["domain"].shape == (B2, DOMAIN_CLASSES)
    assert out2["classifier"].shape == (B2, CLASSIFIER_CLASSES)
    assert jnp.allclose(out2["domain"], dom_ref2, atol=1e-5, rtol=1e-5)
    assert jnp.allclose(out2["classifier"], cls_ref2, atol=1e-5, rtol=1e-5)

    print("KERNEL_OK")
</pallas_src>

<mosaic_0001>
module attributes {stable_mosaic.version = 11 : i64} {
  func.func @dann_heads_kernel(%arg0: i32, %arg1: memref<8x768xf32, #tpu.memory_space<vmem>>, %arg2: memref<768x1024xf32, #tpu.memory_space<vmem>>, %arg3: memref<1x1024xf32, #tpu.memory_space<vmem>>, %arg4: memref<1x1024xf32, #tpu.memory_space<vmem>>, %arg5: memref<1x1024xf32, #tpu.memory_space<vmem>>, %arg6: memref<1024x256xf32, #tpu.memory_space<vmem>>, %arg7: memref<1x256xf32, #tpu.memory_space<vmem>>, %arg8: memref<8x256xf32, #tpu.memory_space<vmem>>) attributes {dimension_semantics = [#tpu.dimension_semantics<parallel>], iteration_bounds = array<i64: 1>, scalar_prefetch = 0 : i64, scratch_operands = 0 : i64, tpu.core_type = #tpu.core_type<tc>, window_params = [{transform_indices = @transform_0, window_bounds = array<i64: 8, 768>}, {pipeline_mode = #tpu.pipeline_mode<synchronous>, transform_indices = @transform_1, window_bounds = array<i64: 768, 1024>}, {pipeline_mode = #tpu.pipeline_mode<synchronous>, transform_indices = @transform_2, window_bounds = array<i64: 1, 1024>}, {pipeline_mode = #tpu.pipeline_mode<synchronous>, transform_indices = @transform_3, window_bounds = array<i64: 1, 1024>}, {pipeline_mode = #tpu.pipeline_mode<synchronous>, transform_indices = @transform_4, window_bounds = array<i64: 1, 1024>}, {pipeline_mode = #tpu.pipeline_mode<synchronous>, transform_indices = @transform_5, window_bounds = array<i64: 1024, 256>}, {pipeline_mode = #tpu.pipeline_mode<synchronous>, transform_indices = @transform_6, window_bounds = array<i64: 1, 256>}, {transform_indices = @transform_7, window_bounds = array<i64: 8, 256>}]} {
    %c0 = arith.constant 0 : index
    %c0_0 = arith.constant 0 : index
    %0 = vector.load %arg1[%c0, %c0_0] : memref<8x768xf32, #tpu.memory_space<vmem>>, vector<8x768xf32>
    %c0_1 = arith.constant 0 : index
    %c0_2 = arith.constant 0 : index
    %1 = vector.load %arg2[%c0_1, %c0_2] : memref<768x1024xf32, #tpu.memory_space<vmem>>, vector<768x1024xf32>
    %cst = arith.constant dense<0.000000e+00> : vector<8x1024xf32>
    %2 = tpu.matmul %0, %1, %cst {dimension_numbers = #tpu.dot_dimension_numbers<[1], [0], [0], [1], [0, 0, 1, 1], [], []>} : vector<8x768xf32>, vector<768x1024xf32>, vector<8x1024xf32> -> vector<8x1024xf32>
    %c0_3 = arith.constant 0 : index
    %c0_4 = arith.constant 0 : index
    %3 = vector.load %arg3[%c0_3, %c0_4] : memref<1x1024xf32, #tpu.memory_space<vmem>>, vector<1x1024xf32>
    %4 = vector.broadcast %3 : vector<1x1024xf32> to vector<8x1024xf32>
    %5 = arith.addf %2, %4 : vector<8x1024xf32>
    %cst_5 = arith.constant 5.000000e-01 : f32
    %6 = vector.broadcast %cst_5 : f32 to vector<8x1024xf32>
    %7 = arith.mulf %6, %5 : vector<8x1024xf32>
    %cst_6 = arith.constant 0.707106769 : f32
    %8 = vector.broadcast %cst_6 : f32 to vector<8x1024xf32>
    %9 = arith.mulf %5, %8 : vector<8x1024xf32>
    %10 = math.erf %9 : vector<8x1024xf32>
    %cst_7 = arith.constant 1.000000e+00 : f32
    %11 = vector.broadcast %cst_7 : f32 to vector<8x1024xf32>
    %12 = arith.addf %11, %10 : vector<8x1024xf32>
    %13 = arith.mulf %7, %12 : vector<8x1024xf32>
    %14 = vector.extract_strided_slice %13 {offsets = [0, 0], sizes = [8, 512], strides = [1, 1]} : vector<8x1024xf32> to vector<8x512xf32>
    %c0_8 = arith.constant 0 : index
    %c0_9 = arith.constant 0 : index
    %15 = vector.load %arg4[%c0_8, %c0_9] : memref<1x1024xf32, #tpu.memory_space<vmem>>, vector<1x512xf32>
    %c0_10 = arith.constant 0 : index
    %c0_11 = arith.constant 0 : index
    %16 = vector.load %arg5[%c0_10, %c0_11] : memref<1x1024xf32, #tpu.memory_space<vmem>>, vector<1x512xf32>
    %cst_12 = arith.constant dense<0.000000e+00> : vector<8xf32>
    %17 = vector.multi_reduction <add>, %14, %cst_12 [1] : vector<8x512xf32> to vector<8xf32>
    %18 = vector.shape_cast %17 : vector<8xf32> to vector<8x1xf32>
    %cst_13 = arith.constant 5.120000e+02 : f32
    %19 = vector.broadcast %cst_13 : f32 to vector<8x1xf32>
    %20 = arith.divf %18, %19 : vector<8x1xf32>
    %21 = vector.broadcast %20 : vector<8x1xf32> to vector<8x512xf32>
    %22 = arith.subf %14, %21 : vector<8x512xf32>
    %23 = arith.mulf %22, %22 : vector<8x512xf32>
    %cst_14 = arith.constant dense<0.000000e+00> : vector<8xf32>
    %24 = vector.multi_reduction <add>, %23, %cst_14 [1] : vector<8x512xf32> to vector<8xf32>
    %25 = vector.shape_cast %24 : vector<8xf32> to vector<8x1xf32>
    %cst_15 = arith.constant 5.120000e+02 : f32
    %26 = vector.broadcast %cst_15 : f32 to vector<8x1xf32>
    %27 = arith.divf %25, %26 : vector<8x1xf32>
    %cst_16 = arith.constant 9.99999974E-6 : f32
    %28 = vector.broadcast %cst_16 : f32 to vector<8x1xf32>
    %29 = arith.addf %27, %28 : vector<8x1xf32>
    %30 = math.rsqrt %29 : vector<8x1xf32>
    %31 = vector.broadcast %30 : vector<8x1xf32> to vector<8x512xf32>
    %32 = arith.mulf %22, %31 : vector<8x512xf32>
    %33 = vector.broadcast %15 : vector<1x512xf32> to vector<8x512xf32>
    %34 = arith.mulf %32, %33 : vector<8x512xf32>
    %35 = vector.broadcast %16 : vector<1x512xf32> to vector<8x512xf32>
    %36 = arith.addf %34, %35 : vector<8x512xf32>
    %37 = vector.extract_strided_slice %13 {offsets = [0, 512], sizes = [8, 512], strides = [1, 1]} : vector<8x1024xf32> to vector<8x512xf32>
    %c0_17 = arith.constant 0 : index
    %c512 = arith.constant 512 : index
    %38 = vector.load %arg4[%c0_17, %c512] : memref<1x1024xf32, #tpu.memory_space<vmem>>, vector<1x512xf32>
    %c0_18 = arith.constant 0 : index
    %c512_19 = arith.constant 512 : index
    %39 = vector.load %arg5[%c0_18, %c512_19] : memref<1x1024xf32, #tpu.memory_space<vmem>>, vector<1x512xf32>
    %cst_20 = arith.constant dense<0.000000e+00> : vector<8xf32>
    %40 = vector.multi_reduction <add>, %37, %cst_20 [1] : vector<8x512xf32> to vector<8xf32>
    %41 = vector.shape_cast %40 : vector<8xf32> to vector<8x1xf32>
    %cst_21 = arith.constant 5.120000e+02 : f32
    %42 = vector.broadcast %cst_21 : f32 to vector<8x1xf32>
    %43 = arith.divf %41, %42 : vector<8x1xf32>
    %44 = vector.broadcast %43 : vector<8x1xf32> to vector<8x512xf32>
    %45 = arith.subf %37, %44 : vector<8x512xf32>
    %46 = arith.mulf %45, %45 : vector<8x512xf32>
    %cst_22 = arith.constant dense<0.000000e+00> : vector<8xf32>
    %47 = vector.multi_reduction <add>, %46, %cst_22 [1] : vector<8x512xf32> to vector<8xf32>
    %48 = vector.shape_cast %47 : vector<8xf32> to vector<8x1xf32>
    %cst_23 = arith.constant 5.120000e+02 : f32
    %49 = vector.broadcast %cst_23 : f32 to vector<8x1xf32>
    %50 = arith.divf %48, %49 : vector<8x1xf32>
    %cst_24 = arith.constant 9.99999974E-6 : f32
    %51 = vector.broadcast %cst_24 : f32 to vector<8x1xf32>
    %52 = arith.addf %50, %51 : vector<8x1xf32>
    %53 = math.rsqrt %52 : vector<8x1xf32>
    %54 = vector.broadcast %53 : vector<8x1xf32> to vector<8x512xf32>
    %55 = arith.mulf %45, %54 : vector<8x512xf32>
    %56 = vector.broadcast %38 : vector<1x512xf32> to vector<8x512xf32>
    %57 = arith.mulf %55, %56 : vector<8x512xf32>
    %58 = vector.broadcast %39 : vector<1x512xf32> to vector<8x512xf32>
    %59 = arith.addf %57, %58 : vector<8x512xf32>
    %60 = tpu.concatenate %36, %59 in 1 : vector<8x512xf32>, vector<8x512xf32> -> vector<8x1024xf32>
    %c0_25 = arith.constant 0 : index
    %c0_26 = arith.constant 0 : index
    %61 = vector.load %arg6[%c0_25, %c0_26] : memref<1024x256xf32, #tpu.memory_space<vmem>>, vector<1024x256xf32>
    %cst_27 = arith.constant dense<0.000000e+00> : vector<8x256xf32>
    %62 = tpu.matmul %60, %61, %cst_27 {dimension_numbers = #tpu.dot_dimension_numbers<[1], [0], [0], [1], [0, 0, 1, 1], [], []>} : vector<8x1024xf32>, vector<1024x256xf32>, vector<8x256xf32> -> vector<8x256xf32>
    %c0_28 = arith.constant 0 : index
    %c0_29 = arith.constant 0 : index
    %63 = vector.load %arg7[%c0_28, %c0_29] : memref<1x256xf32, #tpu.memory_space<vmem>>, vector<1x256xf32>
    %64 = vector.broadcast %63 : vector<1x256xf32> to vector<8x256xf32>
    %65 = arith.addf %62, %64 : vector<8x256xf32>
    %cst_30 = arith.constant 5.000000e-01 : f32
    %66 = vector.broadcast %cst_30 : f32 to vector<8x256xf32>
    %67 = arith.mulf %66, %65 : vector<8x256xf32>
    %cst_31 = arith.constant 0.707106769 : f32
    %68 = vector.broadcast %cst_31 : f32 to vector<8x256xf32>
    %69 = arith.mulf %65, %68 : vector<8x256xf32>
    %70 = math.erf %69 : vector<8x256xf32>
    %cst_32 = arith.constant 1.000000e+00 : f32
    %71 = vector.broadcast %cst_32 : f32 to vector<8x256xf32>
    %72 = arith.addf %71, %70 : vector<8x256xf32>
    %73 = arith.mulf %67, %72 : vector<8x256xf32>
    %c0_33 = arith.constant 0 : index
    %c0_34 = arith.constant 0 : index
    %74 = vector.load %arg8[%c0_33, %c0_34] : memref<8x256xf32, #tpu.memory_space<vmem>>, vector<8x256xf32>
    tpu.vector_store %arg8[%c0_33, %c0_34], %73 {strides = array<i32>} : memref<8x256xf32, #tpu.memory_space<vmem>>, vector<8x256xf32>,
    return
  }
  func.func @transform_0(%arg0: i32) -> (i32, i32) {
    %c0_i32 = arith.constant 0 : i32
    %c0_i32_0 = arith.constant 0 : i32
    return %arg0, %c0_i32 : i32, i32
  }
  func.func @transform_1(%arg0: i32) -> (i32, i32) {
    %c0_i32 = arith.constant 0 : i32
    %c0_i32_0 = arith.constant 0 : i32
    %c0_i32_1 = arith.constant 0 : i32
    return %c0_i32, %c0_i32_0 : i32, i32
  }
  func.func @transform_2(%arg0: i32) -> (i32, i32) {
    %c0_i32 = arith.constant 0 : i32
    %c0_i32_0 = arith.constant 0 : i32
    %c0_i32_1 = arith.constant 0 : i32
    return %c0_i32, %c0_i32_0 : i32, i32
  }
  func.func @transform_3(%arg0: i32) -> (i32, i32) {
    %c0_i32 = arith.constant 0 : i32
    %c0_i32_0 = arith.constant 0 : i32
    %c0_i32_1 = arith.constant 0 : i32
    return %c0_i32, %c0_i32_0 : i32, i32
  }
  func.func @transform_4(%arg0: i32) -> (i32, i32) {
    %c0_i32 = arith.constant 0 : i32
    %c0_i32_0 = arith.constant 0 : i32
    %c0_i32_1 = arith.constant 0 : i32
    return %c0_i32, %c0_i32_0 : i32, i32
  }
  func.func @transform_5(%arg0: i32) -> (i32, i32) {
    %c0_i32 = arith.constant 0 : i32
    %c0_i32_0 = arith.constant 0 : i32
    %c0_i32_1 = arith.constant 0 : i32
    return %c0_i32, %c0_i32_0 : i32, i32
  }
  func.func @transform_6(%arg0: i32) -> (i32, i32) {
    %c0_i32 = arith.constant 0 : i32
    %c0_i32_0 = arith.constant 0 : i32
    %c0_i32_1 = arith.constant 0 : i32
    return %c0_i32, %c0_i32_0 : i32, i32
  }
  func.func @transform_7(%arg0: i32) -> (i32, i32) {
    %c0_i32 = arith.constant 0 : i32
    %c0_i32_0 = arith.constant 0 : i32
    return %arg0, %c0_i32 : i32, i32
  }
}

</mosaic_0001>

<llo_original>
// kernel: dann_forward.1
$region0: #{dann_forward.1}
  #allocation0 [shape = 'u32[]', space=smem, size = 0x4, offset = 0x4, fixed_abs, tag = 'smem constant byte address 0x4 - core index']
  #allocation1 [shape = 'u32[144,128]{1,0:T(1,128)}', space=vmem, size = 0x12000, scoped, tag = 'internal scratch']
  %s0 = inlined_call_operand.vmem [shape: f32[8,768], index: 0, kind: input, shape index: {}]
  %s1 = inlined_call_operand.vmem [shape: f32[768,1024], index: 1, kind: input, shape index: {}]
  %s2 = inlined_call_operand.vmem [shape: f32[1,1024], index: 2, kind: input, shape index: {}]
  %s3 = inlined_call_operand.vmem [shape: f32[1,1024], index: 3, kind: input, shape index: {}]
  %s4 = inlined_call_operand.vmem [shape: f32[1,1024], index: 4, kind: input, shape index: {}]
  %s5 = inlined_call_operand.vmem [shape: f32[1024,256], index: 5, kind: input, shape index: {}]
  %s6 = inlined_call_operand.vmem [shape: f32[1,256], index: 6, kind: input, shape index: {}]
  %s7 = inlined_call_operand.vmem [shape: f32[8,256], index: 7, kind: output, shape index: {}]
  %s8 = sld [smem:[#allocation0]]
  $region38: #{dann_forward.1} parent=0
    _
  %s10 = ssub.s32 1, %s8
  %s11 = scalar_select 0, %s10, %s8
  // Predicated region
  $region2: #{dann_forward.1} parent=0 // pred_check
    _
  $region3: #{dann_forward.1} parent=0 // pred_check_branch
    %13 = sbr.rel (0) target = $region5
  $region4: #{dann_forward.1} parent=0 // pred_region
    _
  $region5: #{dann_forward.1} parent=0 // pred_fallthru
    _
  // Predicated region
  $region6: #{dann_forward.1} parent=0 // pred_check
    _
  $region7: #{dann_forward.1} parent=0 // pred_check_branch
    %15 = sbr.rel (0) target = $region9
  $region8: #{dann_forward.1} parent=0 // pred_region
    _
  $region9: #{dann_forward.1} parent=0 // pred_fallthru
    _
  // Predicated region
  $region10: #{dann_forward.1} parent=0 // pred_check
    _
  $region11: #{dann_forward.1} parent=0 // pred_check_branch
    %17 = sbr.rel (0) target = $region13
  $region12: #{dann_forward.1} parent=0 // pred_region
    _
  $region13: #{dann_forward.1} parent=0 // pred_fallthru
    _
  // Predicated region
  $region14: #{dann_forward.1} parent=0 // pred_check
    _
  $region15: #{dann_forward.1} parent=0 // pred_check_branch
    %19 = sbr.rel (0) target = $region17
  $region16: #{dann_forward.1} parent=0 // pred_region
    _
  $region17: #{dann_forward.1} parent=0 // pred_fallthru
    _
  // Predicated region
  $region18: #{dann_forward.1} parent=0 // pred_check
    _
  $region19: #{dann_forward.1} parent=0 // pred_check_branch
    %21 = sbr.rel (0) target = $region21
  $region20: #{dann_forward.1} parent=0 // pred_region
    _
  $region21: #{dann_forward.1} parent=0 // pred_fallthru
    _
  // Predicated region
  $region22: #{dann_forward.1} parent=0 // pred_check
    _
  $region23: #{dann_forward.1} parent=0 // pred_check_branch
    %23 = sbr.rel (0) target = $region25
  $region24: #{dann_forward.1} parent=0 // pred_region
    _
  $region25: #{dann_forward.1} parent=0 // pred_fallthru
    _
  // Predicated region
  $region26: #{dann_forward.1} parent=0 // pred_check
    _
  $region27: #{dann_forward.1} parent=0 // pred_check_branch
    %25 = sbr.rel (0) target = $region29
  $region28: #{dann_forward.1} parent=0 // pred_region
    _
  $region29: #{dann_forward.1} parent=0 // pred_fallthru
    _
  %v26 = vld [vmem:[%s0] sm:$0xff]
  %v27 = vld [vmem:[%s0 + $0x8] sm:$0xff]
  %v28 = vld [vmem:[%s0 + $0x10] sm:$0xff]
  %v29 = vld [vmem:[%s0 + $0x18] sm:$0xff]
  %v30 = vld [vmem:[%s0 + $0x20] sm:$0xff]
  %v31 = vld [vmem:[%s0 + $0x28] sm:$0xff]
  %v32 = vld [vmem:[%s1] sm:$0xff]
  %v33 = vld [vmem:[%s1 + $0x8] sm:$0xff]
  %v34 = vld [vmem:[%s1 + $0x10] sm:$0xff]
  %v35 = vld [vmem:[%s1 + $0x18] sm:$0xff]
  %v36 = vld [vmem:[%s1 + $0x20] sm:$0xff]
  %v37 = vld [vmem:[%s1 + $0x28] sm:$0xff]
  %v38 = vld [vmem:[%s1 + $0x30] sm:$0xff]
  %v39 = vld [vmem:[%s1 + $0x38] sm:$0xff]
  %v40 = vld [vmem:[%s1 + $0x40] sm:$0xff]
  %v41 = vld [vmem:[%s1 + $0x48] sm:$0xff]
  %v42 = vld [vmem:[%s1 + $0x50] sm:$0xff]
  %v43 = vld [vmem:[%s1 + $0x58] sm:$0xff]
  %v44 = vld [vmem:[%s1 + $0x60] sm:$0xff]
  %v45 = vld [vmem:[%s1 + $0x68] sm:$0xff]
  %v46 = vld [vmem:[%s1 + $0x70] sm:$0xff]
  %v47 = vld [vmem:[%s1 + $0x78] sm:$0xff]
  %v48 = vld [vmem:[%s1 + $0x80] sm:$0xff]
  %v49 = vld [vmem:[%s1 + $0x88] sm:$0xff]
  %v50 = vld [vmem:[%s1 + $0x90] sm:$0xff]
  %v51 = vld [vmem:[%s1 + $0x98] sm:$0xff]
  %v52 = vld [vmem:[%s1 + $0xa0] sm:$0xff]
  %v53 = vld [vmem:[%s1 + $0xa8] sm:$0xff]
  %v54 = vld [vmem:[%s1 + $0xb0] sm:$0xff]
  %v55 = vld [vmem:[%s1 + $0xb8] sm:$0xff]
  %v56 = vld [vmem:[%s1 + $0xc0] sm:$0xff]
  %v57 = vld [vmem:[%s1 + $0xc8] sm:$0xff]
  %v58 = vld [vmem:[%s1 + $0xd0] sm:$0xff]
  %v59 = vld [vmem:[%s1 + $0xd8] sm:$0xff]
  %v60 = vld [vmem:[%s1 + $0xe0] sm:$0xff]
  %v61 = vld [vmem:[%s1 + $0xe8] sm:$0xff]
  %v62 = vld [vmem:[%s1 + $0xf0] sm:$0xff]
  %v63 = vld [vmem:[%s1 + $0xf8] sm:$0xff]
  %v64 = vld [vmem:[%s1 + $0x100] sm:$0xff]
  %v65 = vld [vmem:[%s1 + $0x108] sm:$0xff]
  %v66 = vld [vmem:[%s1 + $0x110] sm:$0xff]
  %v67 = vld [vmem:[%s1 + $0x118] sm:$0xff]
  %v68 = vld [vmem:[%s1 + $0x120] sm:$0xff]
  %v69 = vld [vmem:[%s1 + $0x128] sm:$0xff]
  %v70 = vld [vmem:[%s1 + $0x130] sm:$0xff]
  %v71 = vld [vmem:[%s1 + $0x138] sm:$0xff]
  %v72 = vld [vmem:[%s1 + $0x140] sm:$0xff]
  %v73 = vld [vmem:[%s1 + $0x148] sm:$0xff]
  %v74 = vld [vmem:[%s1 + $0x150] sm:$0xff]
  %v75 = vld [vmem:[%s1 + $0x158] sm:$0xff]
  %v76 = vld [vmem:[%s1 + $0x160] sm:$0xff]
  %v77 = vld [vmem:[%s1 + $0x168] sm:$0xff]
  %v78 = vld [vmem:[%s1 + $0x170] sm:$0xff]
  %v79 = vld [vmem:[%s1 + $0x178] sm:$0xff]
  %v80 = vld [vmem:[%s1 + $0x180] sm:$0xff]
  %v81 = vld [vmem:[%s1 + $0x188] sm:$0xff]
  %v82 = vld [vmem:[%s1 + $0x190] sm:$0xff]
  %v83 = vld [vmem:[%s1 + $0x198] sm:$0xff]
  %v84 = vld [vmem:[%s1 + $0x1a0] sm:$0xff]
  %v85 = vld [vmem:[%s1 + $0x1a8] sm:$0xff]
  %v86 = vld [vmem:[%s1 + $0x1b0] sm:$0xff]
  %v87 = vld [vmem:[%s1 + $0x1b8] sm:$0xff]
  %v88 = vld [vmem:[%s1 + $0x1c0] sm:$0xff]
  %v89 = vld [vmem:[%s1 + $0x1c8] sm:$0xff]
  %v90 = vld [vmem:[%s1 + $0x1d0] sm:$0xff]
  %v91 = vld [vmem:[%s1 + $0x1d8] sm:$0xff]
  %v92 = vld [vmem:[%s1 + $0x1e0] sm:$0xff]
  %v93 = vld [vmem:[%s1 + $0x1e8] sm:$0xff]
  %v94 = vld [vmem:[%s1 + $0x1f0] sm:$0xff]
  %v95 = vld [vmem:[%s1 + $0x1f8] sm:$0xff]
  %v96 = vld [vmem:[%s1 + $0x200] sm:$0xff]
  %v97 = vld [vmem:[%s1 + $0x208] sm:$0xff]
  %v98 = vld [vmem:[%s1 + $0x210] sm:$0xff]
  %v99 = vld [vmem:[%s1 + $0x218] sm:$0xff]
  %v100 = vld [vmem:[%s1 + $0x220] sm:$0xff]
  %v101 = vld [vmem:[%s1 + $0x228] sm:$0xff]
  %v102 = vld [vmem:[%s1 + $0x230] sm:$0xff]
  %v103 = vld [vmem:[%s1 + $0x238] sm:$0xff]
  %v104 = vld [vmem:[%s1 + $0x240] sm:$0xff]
  %v105 = vld [vmem:[%s1 + $0x248] sm:$0xff]
  %v106 = vld [vmem:[%s1 + $0x250] sm:$0xff]
  %v107 = vld [vmem:[%s1 + $0x258] sm:$0xff]
  %v108 = vld [vmem:[%s1 + $0x260] sm:$0xff]
  %v109 = vld [vmem:[%s1 + $0x268] sm:$0xff]
  %v110 = vld [vmem:[%s1 + $0x270] sm:$0xff]
  %v111 = vld [vmem:[%s1 + $0x278] sm:$0xff]
  %v112 = vld [vmem:[%s1 + $0x280] sm:$0xff]
  %v113 = vld [vmem:[%s1 + $0x288] sm:$0xff]
  %v114 = vld [vmem:[%s1 + $0x290] sm:$0xff]
  %v115 = vld [vmem:[%s1 + $0x298] sm:$0xff]
  %v116 = vld [vmem:[%s1 + $0x2a0] sm:$0xff]
  %v117 = vld [vmem:[%s1 + $0x2a8] sm:$0xff]
  %v118 = vld [vmem:[%s1 + $0x2b0] sm:$0xff]
  %v119 = vld [vmem:[%s1 + $0x2b8] sm:$0xff]
  %v120 = vld [vmem:[%s1 + $0x2c0] sm:$0xff]
  %v121 = vld [vmem:[%s1 + $0x2c8] sm:$0xff]
  %v122 = vld [vmem:[%s1 + $0x2d0] sm:$0xff]
  %v123 = vld [vmem:[%s1 + $0x2d8] sm:$0xff]
  %v124 = vld [vmem:[%s1 + $0x2e0] sm:$0xff]
  %v125 = vld [vmem:[%s1 + $0x2e8] sm:$0xff]
  %v126 = vld [vmem:[%s1 + $0x2f0] sm:$0xff]
  %v127 = vld [vmem:[%s1 + $0x2f8] sm:$0xff]
  %v128 = vld [vmem:[%s1 + $0x300] sm:$0xff]
  %v129 = vld [vmem:[%s1 + $0x308] sm:$0xff]
  %v130 = vld [vmem:[%s1 + $0x310] sm:$0xff]
  %v131 = vld [vmem:[%s1 + $0x318] sm:$0xff]
  %v132 = vld [vmem:[%s1 + $0x320] sm:$0xff]
  %v133 = vld [vmem:[%s1 + $0x328] sm:$0xff]
  %v134 = vld [vmem:[%s1 + $0x330] sm:$0xff]
  %v135 = vld [vmem:[%s1 + $0x338] sm:$0xff]
  %v136 = vld [vmem:[%s1 + $0x340] sm:$0xff]
  %v137 = vld [vmem:[%s1 + $0x348] sm:$0xff]
  %v138 = vld [vmem:[%s1 + $0x350] sm:$0xff]
  %v139 = vld [vmem:[%s1 + $0x358] sm:$0xff]
  %v140 = vld [vmem:[%s1 + $0x360] sm:$0xff]
  %v141 = vld [vmem:[%s1 + $0x368] sm:$0xff]
  %v142 = vld [vmem:[%s1 + $0x370] sm:$0xff]
  %v143 = vld [vmem:[%s1 + $0x378] sm:$0xff]
  %v144 = vld [vmem:[%s1 + $0x380] sm:$0xff]
  %v145 = vld [vmem:[%s1 + $0x388] sm:$0xff]
  %v146 = vld [vmem:[%s1 + $0x390] sm:$0xff]
  %v147 = vld [vmem:[%s1 + $0x398] sm:$0xff]
  %v148 = vld [vmem:[%s1 + $0x3a0] sm:$0xff]
  %v149 = vld [vmem:[%s1 + $0x3a8] sm:$0xff]
  %v150 = vld [vmem:[%s1 + $0x3b0] sm:$0xff]
  %v151 = vld [vmem:[%s1 + $0x3b8] sm:$0xff]
  %v152 = vld [vmem:[%s1 + $0x3c0] sm:$0xff]
  %v153 = vld [vmem:[%s1 + $0x3c8] sm:$0xff]
  %v154 = vld [vmem:[%s1 + $0x3d0] sm:$0xff]
  %v155 = vld [vmem:[%s1 + $0x3d8] sm:$0xff]
  %v156 = vld [vmem:[%s1 + $0x3e0] sm:$0xff]
  %v157 = vld [vmem:[%s1 + $0x3e8] sm:$0xff]
  %v158 = vld [vmem:[%s1 + $0x3f0] sm:$0xff]
  %v159 = vld [vmem:[%s1 + $0x3f8] sm:$0xff]
  %v160 = vld [vmem:[%s1 + $0x400] sm:$0xff]
  %v161 = vld [vmem:[%s1 + $0x408] sm:$0xff]
  %v162 = vld [vmem:[%s1 + $0x410] sm:$0xff]
  %v163 = vld [vmem:[%s1 + $0x418] sm:$0xff]
  %v164 = vld [vmem:[%s1 + $0x420] sm:$0xff]
  %v165 = vld [vmem:[%s1 + $0x428] sm:$0xff]
  %v166 = vld [vmem:[%s1 + $0x430] sm:$0xff]
  %v167 = vld [vmem:[%s1 + $0x438] sm:$0xff]
  %v168 = vld [vmem:[%s1 + $0x440] sm:$0xff]
  %v169 = vld [vmem:[%s1 + $0x448] sm:$0xff]
  %v170 = vld [vmem:[%s1 + $0x450] sm:$0xff]
  %v171 = vld [vmem:[%s1 + $0x458] sm:$0xff]
  %v172 = vld [vmem:[%s1 + $0x460] sm:$0xff]
  %v173 = vld [vmem:[%s1 + $0x468] sm:$0xff]
  %v174 = vld [vmem:[%s1 + $0x470] sm:$0xff]
  %v175 = vld [vmem:[%s1 + $0x478] sm:$0xff]
  %v176 = vld [vmem:[%s1 + $0x480] sm:$0xff]
  %v177 = vld [vmem:[%s1 + $0x488] sm:$0xff]
  %v178 = vld [vmem:[%s1 + $0x490] sm:$0xff]
  %v179 = vld [vmem:[%s1 + $0x498] sm:$0xff]
  %v180 = vld [vmem:[%s1 + $0x4a0] sm:$0xff]
  %v181 = vld [vmem:[%s1 + $0x4a8] sm:$0xff]
  %v182 = vld [vmem:[%s1 + $0x4b0] sm:$0xff]
  %v183 = vld [vmem:[%s1 + $0x4b8] sm:$0xff]
  %v184 = vld [vmem:[%s1 + $0x4c0] sm:$0xff]
  %v185 = vld [vmem:[%s1 + $0x4c8] sm:$0xff]
  %v186 = vld [vmem:[%s1 + $0x4d0] sm:$0xff]
  %v187 = vld [vmem:[%s1 + $0x4d8] sm:$0xff]
  %v188 = vld [vmem:[%s1 + $0x4e0] sm:$0xff]
  %v189 = vld [vmem:[%s1 + $0x4e8] sm:$0xff]
  %v190 = vld [vmem:[%s1 + $0x4f0] sm:$0xff]
  %v191 = vld [vmem:[%s1 + $0x4f8] sm:$0xff]
  %v192 = vld [vmem:[%s1 + $0x500] sm:$0xff]
  %v193 = vld [vmem:[%s1 + $0x508] sm:$0xff]
  %v194 = vld [vmem:[%s1 + $0x510] sm:$0xff]
  %v195 = vld [vmem:[%s1 + $0x518] sm:$0xff]
  %v196 = vld [vmem:[%s1 + $0x520] sm:$0xff]
  %v197 = vld [vmem:[%s1 + $0x528] sm:$0xff]
  %v198 = vld [vmem:[%s1 + $0x530] sm:$0xff]
  %v199 = vld [vmem:[%s1 + $0x538] sm:$0xff]
  %v200 = vld [vmem:[%s1 + $0x540] sm:$0xff]
  %v201 = vld [vmem:[%s1 + $0x548] sm:$0xff]
  %v202 = vld [vmem:[%s1 + $0x550] sm:$0xff]
  %v203 = vld [vmem:[%s1 + $0x558] sm:$0xff]
  %v204 = vld [vmem:[%s1 + $0x560] sm:$0xff]
  %v205 = vld [vmem:[%s1 + $0x568] sm:$0xff]
  %v206 = vld [vmem:[%s1 + $0x570] sm:$0xff]
  %v207 = vld [vmem:[%s1 + $0x578] sm:$0xff]
  %v208 = vld [vmem:[%s1 + $0x580] sm:$0xff]
  %v209 = vld [vmem:[%s1 + $0x588] sm:$0xff]
  %v210 = vld [vmem:[%s1 + $0x590] sm:$0xff]
  %v211 = vld [vmem:[%s1 + $0x598] sm:$0xff]
  %v212 = vld [vmem:[%s1 + $0x5a0] sm:$0xff]
  %v213 = vld [vmem:[%s1 + $0x5a8] sm:$0xff]
  %v214 = vld [vmem:[%s1 + $0x5b0] sm:$0xff]
  %v215 = vld [vmem:[%s1 + $0x5b8] sm:$0xff]
  %v216 = vld [vmem:[%s1 + $0x5c0] sm:$0xff]
  %v217 = vld [vmem:[%s1 + $0x5c8] sm:$0xff]
  %v218 = vld [vmem:[%s1 + $0x5d0] sm:$0xff]
  %v219 = vld [vmem:[%s1 + $0x5d8] sm:$0xff]
  %v220 = vld [vmem:[%s1 + $0x5e0] sm:$0xff]
  %v221 = vld [vmem:[%s1 + $0x5e8] sm:$0xff]
  %v222 = vld [vmem:[%s1 + $0x5f0] sm:$0xff]
  %v223 = vld [vmem:[%s1 + $0x5f8] sm:$0xff]
  %v224 = vld [vmem:[%s1 + $0x600] sm:$0xff]
  %v225 = vld [vmem:[%s1 + $0x608] sm:$0xff]
  %v226 = vld [vmem:[%s1 + $0x610] sm:$0xff]
  %v227 = vld [vmem:[%s1 + $0x618] sm:$0xff]
  %v228 = vld [vmem:[%s1 + $0x620] sm:$0xff]
  %v229 = vld [vmem:[%s1 + $0x628] sm:$0xff]
  %v230 = vld [vmem:[%s1 + $0x630] sm:$0xff]
  %v231 = vld [vmem:[%s1 + $0x638] sm:$0xff]
  %v232 = vld [vmem:[%s1 + $0x640] sm:$0xff]
  %v233 = vld [vmem:[%s1 + $0x648] sm:$0xff]
  %v234 = vld [vmem:[%s1 + $0x650] sm:$0xff]
  %v235 = vld [vmem:[%s1 + $0x658] sm:$0xff]
  %v236 = vld [vmem:[%s1 + $0x660] sm:$0xff]
  %v237 = vld [vmem:[%s1 + $0x668] sm:$0xff]
  %v238 = vld [vmem:[%s1 + $0x670] sm:$0xff]
  %v239 = vld [vmem:[%s1 + $0x678] sm:$0xff]
  %v240 = vld [vmem:[%s1 + $0x680] sm:$0xff]
  %v241 = vld [vmem:[%s1 + $0x688] sm:$0xff]
  %v242 = vld [vmem:[%s1 + $0x690] sm:$0xff]
  %v243 = vld [vmem:[%s1 + $0x698] sm:$0xff]
  %v244 = vld [vmem:[%s1 + $0x6a0] sm:$0xff]
  %v245 = vld [vmem:[%s1 + $0x6a8] sm:$0xff]
  %v246 = vld [vmem:[%s1 + $0x6b0] sm:$0xff]
  %v247 = vld [vmem:[%s1 + $0x6b8] sm:$0xff]
  %v248 = vld [vmem:[%s1 + $0x6c0] sm:$0xff]
  %v249 = vld [vmem:[%s1 + $0x6c8] sm:$0xff]
  %v250 = vld [vmem:[%s1 + $0x6d0] sm:$0xff]
  %v251 = vld [vmem:[%s1 + $0x6d8] sm:$0xff]
  %v252 = vld [vmem:[%s1 + $0x6e0] sm:$0xff]
  %v253 = vld [vmem:[%s1 + $0x6e8] sm:$0xff]
  %v254 = vld [vmem:[%s1 + $0x6f0] sm:$0xff]
  %v255 = vld [vmem:[%s1 + $0x6f8] sm:$0xff]
  %v256 = vld [vmem:[%s1 + $0x700] sm:$0xff]
  %v257 = vld [vmem:[%s1 + $0x708] sm:$0xff]
  %v258 = vld [vmem:[%s1 + $0x710] sm:$0xff]
  %v259 = vld [vmem:[%s1 + $0x718] sm:$0xff]
  %v260 = vld [vmem:[%s1 + $0x720] sm:$0xff]
  %v261 = vld [vmem:[%s1 + $0x728] sm:$0xff]
  %v262 = vld [vmem:[%s1 + $0x730] sm:$0xff]
  %v263 = vld [vmem:[%s1 + $0x738] sm:$0xff]
  %v264 = vld [vmem:[%s1 + $0x740] sm:$0xff]
  %v265 = vld [vmem:[%s1 + $0x748] sm:$0xff]
  %v266 = vld [vmem:[%s1 + $0x750] sm:$0xff]
  %v267 = vld [vmem:[%s1 + $0x758] sm:$0xff]
  %v268 = vld [vmem:[%s1 + $0x760] sm:$0xff]
  %v269 = vld [vmem:[%s1 + $0x768] sm:$0xff]
  %v270 = vld [vmem:[%s1 + $0x770] sm:$0xff]
  %v271 = vld [vmem:[%s1 + $0x778] sm:$0xff]
  %v272 = vld [vmem:[%s1 + $0x780] sm:$0xff]
  %v273 = vld [vmem:[%s1 + $0x788] sm:$0xff]
  %v274 = vld [vmem:[%s1 + $0x790] sm:$0xff]
  %v275 = vld [vmem:[%s1 + $0x798] sm:$0xff]
  %v276 = vld [vmem:[%s1 + $0x7a0] sm:$0xff]
  %v277 = vld [vmem:[%s1 + $0x7a8] sm:$0xff]
  %v278 = vld [vmem:[%s1 + $0x7b0] sm:$0xff]
  %v279 = vld [vmem:[%s1 + $0x7b8] sm:$0xff]
  %v280 = vld [vmem:[%s1 + $0x7c0] sm:$0xff]
  %v281 = vld [vmem:[%s1 + $0x7c8] sm:$0xff]
  %v282 = vld [vmem:[%s1 + $0x7d0] sm:$0xff]
  %v283 = vld [vmem:[%s1 + $0x7d8] sm:$0xff]
  %v284 = vld [vmem:[%s1 + $0x7e0] sm:$0xff]
  %v285 = vld [vmem:[%s1 + $0x7e8] sm:$0xff]
  %v286 = vld [vmem:[%s1 + $0x7f0] sm:$0xff]
  %v287 = vld [vmem:[%s1 + $0x7f8] sm:$0xff]
  %v288 = vld [vmem:[%s1 + $0x800] sm:$0xff]
  %v289 = vld [vmem:[%s1 + $0x808] sm:$0xff]
  %v290 = vld [vmem:[%s1 + $0x810] sm:$0xff]
  %v291 = vld [vmem:[%s1 + $0x818] sm:$0xff]
  %v292 = vld [vmem:[%s1 + $0x820] sm:$0xff]
  %v293 = vld [vmem:[%s1 + $0x828] sm:$0xff]
  %v294 = vld [vmem:[%s1 + $0x830] sm:$0xff]
  %v295 = vld [vmem:[%s1 + $0x838] sm:$0xff]
  %v296 = vld [vmem:[%s1 + $0x840] sm:$0xff]
  %v297 = vld [vmem:[%s1 + $0x848] sm:$0xff]
  %v298 = vld [vmem:[%s1 + $0x850] sm:$0xff]
  %v299 = vld [vmem:[%s1 + $0x858] sm:$0xff]
  %v300 = vld [vmem:[%s1 + $0x860] sm:$0xff]
  %v301 = vld [vmem:[%s1 + $0x868] sm:$0xff]
  %v302 = vld [vmem:[%s1 + $0x870] sm:$0xff]
  %v303 = vld [vmem:[%s1 + $0x878] sm:$0xff]
  %v304 = vld [vmem:[%s1 + $0x880] sm:$0xff]
  %v305 = vld [vmem:[%s1 + $0x888] sm:$0xff]
  %v306 = vld [vmem:[%s1 + $0x890] sm:$0xff]
  %v307 = vld [vmem:[%s1 + $0x898] sm:$0xff]
  %v308 = vld [vmem:[%s1 + $0x8a0] sm:$0xff]
  %v309 = vld [vmem:[%s1 + $0x8a8] sm:$0xff]
  %v310 = vld [vmem:[%s1 + $0x8b0] sm:$0xff]
  %v311 = vld [vmem:[%s1 + $0x8b8] sm:$0xff]
  %v312 = vld [vmem:[%s1 + $0x8c0] sm:$0xff]
  %v313 = vld [vmem:[%s1 + $0x8c8] sm:$0xff]
  %v314 = vld [vmem:[%s1 + $0x8d0] sm:$0xff]
  %v315 = vld [vmem:[%s1 + $0x8d8] sm:$0xff]
  %v316 = vld [vmem:[%s1 + $0x8e0] sm:$0xff]
  %v317 = vld [vmem:[%s1 + $0x8e8] sm:$0xff]
  %v318 = vld [vmem:[%s1 + $0x8f0] sm:$0xff]
  %v319 = vld [vmem:[%s1 + $0x8f8] sm:$0xff]
  %v320 = vld [vmem:[%s1 + $0x900] sm:$0xff]
  %v321 = vld [vmem:[%s1 + $0x908] sm:$0xff]
  %v322 = vld [vmem:[%s1 + $0x910] sm:$0xff]
  %v323 = vld [vmem:[%s1 + $0x918] sm:$0xff]
  %v324 = vld [vmem:[%s1 + $0x920] sm:$0xff]
  %v325 = vld [vmem:[%s1 + $0x928] sm:$0xff]
  %v326 = vld [vmem:[%s1 + $0x930] sm:$0xff]
  %v327 = vld [vmem:[%s1 + $0x938] sm:$0xff]
  %v328 = vld [vmem:[%s1 + $0x940] sm:$0xff]
  %v329 = vld [vmem:[%s1 + $0x948] sm:$0xff]
  %v330 = vld [vmem:[%s1 + $0x950] sm:$0xff]
  %v331 = vld [vmem:[%s1 + $0x958] sm:$0xff]
  %v332 = vld [vmem:[%s1 + $0x960] sm:$0xff]
  %v333 = vld [vmem:[%s1 + $0x968] sm:$0xff]
  %v334 = vld [vmem:[%s1 + $0x970] sm:$0xff]
  %v335 = vld [vmem:[%s1 + $0x978] sm:$0xff]
  %v336 = vld [vmem:[%s1 + $0x980] sm:$0xff]
  %v337 = vld [vmem:[%s1 + $0x988] sm:$0xff]
  %v338 = vld [vmem:[%s1 + $0x990] sm:$0xff]
  %v339 = vld [vmem:[%s1 + $0x998] sm:$0xff]
  %v340 = vld [vmem:[%s1 + $0x9a0] sm:$0xff]
  %v341 = vld [vmem:[%s1 + $0x9a8] sm:$0xff]
  %v342 = vld [vmem:[%s1 + $0x9b0] sm:$0xff]
  %v343 = vld [vmem:[%s1 + $0x9b8] sm:$0xff]
  %v344 = vld [vmem:[%s1 + $0x9c0] sm:$0xff]
  %v345 = vld [vmem:[%s1 + $0x9c8] sm:$0xff]
  %v346 = vld [vmem:[%s1 + $0x9d0] sm:$0xff]
  %v347 = vld [vmem:[%s1 + $0x9d8] sm:$0xff]
  %v348 = vld [vmem:[%s1 + $0x9e0] sm:$0xff]
  %v349 = vld [vmem:[%s1 + $0x9e8] sm:$0xff]
  %v350 = vld [vmem:[%s1 + $0x9f0] sm:$0xff]
  %v351 = vld [vmem:[%s1 + $0x9f8] sm:$0xff]
  %v352 = vld [vmem:[%s1 + $0xa00] sm:$0xff]
  %v353 = vld [vmem:[%s1 + $0xa08] sm:$0xff]
  %v354 = vld [vmem:[%s1 + $0xa10] sm:$0xff]
  %v355 = vld [vmem:[%s1 + $0xa18] sm:$0xff]
  %v356 = vld [vmem:[%s1 + $0xa20] sm:$0xff]
  %v357 = vld [vmem:[%s1 + $0xa28] sm:$0xff]
  %v358 = vld [vmem:[%s1 + $0xa30] sm:$0xff]
  %v359 = vld [vmem:[%s1 + $0xa38] sm:$0xff]
  %v360 = vld [vmem:[%s1 + $0xa40] sm:$0xff]
  %v361 = vld [vmem:[%s1 + $0xa48] sm:$0xff]
  %v362 = vld [vmem:[%s1 + $0xa50] sm:$0xff]
  %v363 = vld [vmem:[%s1 + $0xa58] sm:$0xff]
  %v364 = vld [vmem:[%s1 + $0xa60] sm:$0xff]
  %v365 = vld [vmem:[%s1 + $0xa68] sm:$0xff]
  %v366 = vld [vmem:[%s1 + $0xa70] sm:$0xff]
  %v367 = vld [vmem:[%s1 + $0xa78] sm:$0xff]
  %v368 = vld [vmem:[%s1 + $0xa80] sm:$0xff]
  %v369 = vld [vmem:[%s1 + $0xa88] sm:$0xff]
  %v370 = vld [vmem:[%s1 + $0xa90] sm:$0xff]
  %v371 = vld [vmem:[%s1 + $0xa98] sm:$0xff]
  %v372 = vld [vmem:[%s1 + $0xaa0] sm:$0xff]
  %v373 = vld [vmem:[%s1 + $0xaa8] sm:$0xff]
  %v374 = vld [vmem:[%s1 + $0xab0] sm:$0xff]
  %v375 = vld [vmem:[%s1 + $0xab8] sm:$0xff]
  %v376 = vld [vmem:[%s1 + $0xac0] sm:$0xff]
  %v377 = vld [vmem:[%s1 + $0xac8] sm:$0xff]
  %v378 = vld [vmem:[%s1 + $0xad0] sm:$0xff]
  %v379 = vld [vmem:[%s1 + $0xad8] sm:$0xff]
  %v380 = vld [vmem:[%s1 + $0xae0] sm:$0xff]
  %v381 = vld [vmem:[%s1 + $0xae8] sm:$0xff]
  %v382 = vld [vmem:[%s1 + $0xaf0] sm:$0xff]
  %v383 = vld [vmem:[%s1 + $0xaf8] sm:$0xff]
  %v384 = vld [vmem:[%s1 + $0xb00] sm:$0xff]
  %v385 = vld [vmem:[%s1 + $0xb08] sm:$0xff]
  %v386 = vld [vmem:[%s1 + $0xb10] sm:$0xff]
  %v387 = vld [vmem:[%s1 + $0xb18] sm:$0xff]
  %v388 = vld [vmem:[%s1 + $0xb20] sm:$0xff]
  %v389 = vld [vmem:[%s1 + $0xb28] sm:$0xff]
  %v390 = vld [vmem:[%s1 + $0xb30] sm:$0xff]
  %v391 = vld [vmem:[%s1 + $0xb38] sm:$0xff]
  %v392 = vld [vmem:[%s1 + $0xb40] sm:$0xff]
  %v393 = vld [vmem:[%s1 + $0xb48] sm:$0xff]
  %v394 = vld [vmem:[%s1 + $0xb50] sm:$0xff]
  %v395 = vld [vmem:[%s1 + $0xb58] sm:$0xff]
  %v396 = vld [vmem:[%s1 + $0xb60] sm:$0xff]
  %v397 = vld [vmem:[%s1 + $0xb68] sm:$0xff]
  %v398 = vld [vmem:[%s1 + $0xb70] sm:$0xff]
  %v399 = vld [vmem:[%s1 + $0xb78] sm:$0xff]
  %v400 = vld [vmem:[%s1 + $0xb80] sm:$0xff]
  %v401 = vld [vmem:[%s1 + $0xb88] sm:$0xff]
  %v402 = vld [vmem:[%s1 + $0xb90] sm:$0xff]
  %v403 = vld [vmem:[%s1 + $0xb98] sm:$0xff]
  %v404 = vld [vmem:[%s1 + $0xba0] sm:$0xff]
  %v405 = vld [vmem:[%s1 + $0xba8] sm:$0xff]
  %v406 = vld [vmem:[%s1 + $0xbb0] sm:$0xff]
  %v407 = vld [vmem:[%s1 + $0xbb8] sm:$0xff]
  %v408 = vld [vmem:[%s1 + $0xbc0] sm:$0xff]
  %v409 = vld [vmem:[%s1 + $0xbc8] sm:$0xff]
  %v410 = vld [vmem:[%s1 + $0xbd0] sm:$0xff]
  %v411 = vld [vmem:[%s1 + $0xbd8] sm:$0xff]
  %v412 = vld [vmem:[%s1 + $0xbe0] sm:$0xff]
  %v413 = vld [vmem:[%s1 + $0xbe8] sm:$0xff]
  %v414 = vld [vmem:[%s1 + $0xbf0] sm:$0xff]
  %v415 = vld [vmem:[%s1 + $0xbf8] sm:$0xff]
  %v416 = vld [vmem:[%s1 + $0xc00] sm:$0xff]
  %v417 = vld [vmem:[%s1 + $0xc08] sm:$0xff]
  %v418 = vld [vmem:[%s1 + $0xc10] sm:$0xff]
  %v419 = vld [vmem:[%s1 + $0xc18] sm:$0xff]
  %v420 = vld [vmem:[%s1 + $0xc20] sm:$0xff]
  %v421 = vld [vmem:[%s1 + $0xc28] sm:$0xff]
  %v422 = vld [vmem:[%s1 + $0xc30] sm:$0xff]
  %v423 = vld [vmem:[%s1 + $0xc38] sm:$0xff]
  %v424 = vld [vmem:[%s1 + $0xc40] sm:$0xff]
  %v425 = vld [vmem:[%s1 + $0xc48] sm:$0xff]
  %v426 = vld [vmem:[%s1 + $0xc50] sm:$0xff]
  %v427 = vld [vmem:[%s1 + $0xc58] sm:$0xff]
  %v428 = vld [vmem:[%s1 + $0xc60] sm:$0xff]
  %v429 = vld [vmem:[%s1 + $0xc68] sm:$0xff]
  %v430 = vld [vmem:[%s1 + $0xc70] sm:$0xff]
  %v431 = vld [vmem:[%s1 + $0xc78] sm:$0xff]
  %v432 = vld [vmem:[%s1 + $0xc80] sm:$0xff]
  %v433 = vld [vmem:[%s1 + $0xc88] sm:$0xff]
  %v434 = vld [vmem:[%s1 + $0xc90] sm:$0xff]
  %v435 = vld [vmem:[%s1 + $0xc98] sm:$0xff]
  %v436 = vld [vmem:[%s1 + $0xca0] sm:$0xff]
  %v437 = vld [vmem:[%s1 + $0xca8] sm:$0xff]
  %v438 = vld [vmem:[%s1 + $0xcb0] sm:$0xff]
  %v439 = vld [vmem:[%s1 + $0xcb8] sm:$0xff]
  %v440 = vld [vmem:[%s1 + $0xcc0] sm:$0xff]
  %v441 = vld [vmem:[%s1 + $0xcc8] sm:$0xff]
  %v442 = vld [vmem:[%s1 + $0xcd0] sm:$0xff]
  %v443 = vld [vmem:[%s1 + $0xcd8] sm:$0xff]
  %v444 = vld [vmem:[%s1 + $0xce0] sm:$0xff]
  %v445 = vld [vmem:[%s1 + $0xce8] sm:$0xff]
  %v446 = vld [vmem:[%s1 + $0xcf0] sm:$0xff]
  %v447 = vld [vmem:[%s1 + $0xcf8] sm:$0xff]
  %v448 = vld [vmem:[%s1 + $0xd00] sm:$0xff]
  %v449 = vld [vmem:[%s1 + $0xd08] sm:$0xff]
  %v450 = vld [vmem:[%s1 + $0xd10] sm:$0xff]
  %v451 = vld [vmem:[%s1 + $0xd18] sm:$0xff]
  %v452 = vld [vmem:[%s1 + $0xd20] sm:$0xff]
  %v453 = vld [vmem:[%s1 + $0xd28] sm:$0xff]
  %v454 = vld [vmem:[%s1 + $0xd30] sm:$0xff]
  %v455 = vld [vmem:[%s1 + $0xd38] sm:$0xff]
  %v456 = vld [vmem:[%s1 + $0xd40] sm:$0xff]
  %v457 = vld [vmem:[%s1 + $0xd48] sm:$0xff]
  %v458 = vld [vmem:[%s1 + $0xd50] sm:$0xff]
  %v459 = vld [vmem:[%s1 + $0xd58] sm:$0xff]
  %v460 = vld [vmem:[%s1 + $0xd60] sm:$0xff]
  %v461 = vld [vmem:[%s1 + $0xd68] sm:$0xff]
  %v462 = vld [vmem:[%s1 + $0xd70] sm:$0xff]
  %v463 = vld [vmem:[%s1 + $0xd78] sm:$0xff]
  %v464 = vld [vmem:[%s1 + $0xd80] sm:$0xff]
  %v465 = vld [vmem:[%s1 + $0xd88] sm:$0xff]
  %v466 = vld [vmem:[%s1 + $0xd90] sm:$0xff]
  %v467 = vld [vmem:[%s1 + $0xd98] sm:$0xff]
  %v468 = vld [vmem:[%s1 + $0xda0] sm:$0xff]
  %v469 = vld [vmem:[%s1 + $0xda8] sm:$0xff]
  %v470 = vld [vmem:[%s1 + $0xdb0] sm:$0xff]
  %v471 = vld [vmem:[%s1 + $0xdb8] sm:$0xff]
  %v472 = vld [vmem:[%s1 + $0xdc0] sm:$0xff]
  %v473 = vld [vmem:[%s1 + $0xdc8] sm:$0xff]
  %v474 = vld [vmem:[%s1 + $0xdd0] sm:$0xff]
  %v475 = vld [vmem:[%s1 + $0xdd8] sm:$0xff]
  %v476 = vld [vmem:[%s1 + $0xde0] sm:$0xff]
  %v477 = vld [vmem:[%s1 + $0xde8] sm:$0xff]
  %v478 = vld [vmem:[%s1 + $0xdf0] sm:$0xff]
  %v479 = vld [vmem:[%s1 + $0xdf8] sm:$0xff]
  %v480 = vld [vmem:[%s1 + $0xe00] sm:$0xff]
  %v481 = vld [vmem:[%s1 + $0xe08] sm:$0xff]
  %v482 = vld [vmem:[%s1 + $0xe10] sm:$0xff]
  %v483 = vld [vmem:[%s1 + $0xe18] sm:$0xff]
  %v484 = vld [vmem:[%s1 + $0xe20] sm:$0xff]
  %v485 = vld [vmem:[%s1 + $0xe28] sm:$0xff]
  %v486 = vld [vmem:[%s1 + $0xe30] sm:$0xff]
  %v487 = vld [vmem:[%s1 + $0xe38] sm:$0xff]
  %v488 = vld [vmem:[%s1 + $0xe40] sm:$0xff]
  %v489 = vld [vmem:[%s1 + $0xe48] sm:$0xff]
  %v490 = vld [vmem:[%s1 + $0xe50] sm:$0xff]
  %v491 = vld [vmem:[%s1 + $0xe58] sm:$0xff]
  %v492 = vld [vmem:[%s1 + $0xe60] sm:$0xff]
  %v493 = vld [vmem:[%s1 + $0xe68] sm:$0xff]
  %v494 = vld [vmem:[%s1 + $0xe70] sm:$0xff]
  %v495 = vld [vmem:[%s1 + $0xe78] sm:$0xff]
  %v496 = vld [vmem:[%s1 + $0xe80] sm:$0xff]
  %v497 = vld [vmem:[%s1 + $0xe88] sm:$0xff]
  %v498 = vld [vmem:[%s1 + $0xe90] sm:$0xff]
  %v499 = vld [vmem:[%s1 + $0xe98] sm:$0xff]
  %v500 = vld [vmem:[%s1 + $0xea0] sm:$0xff]
  %v501 = vld [vmem:[%s1 + $0xea8] sm:$0xff]
  %v502 = vld [vmem:[%s1 + $0xeb0] sm:$0xff]
  %v503 = vld [vmem:[%s1 + $0xeb8] sm:$0xff]
  %v504 = vld [vmem:[%s1 + $0xec0] sm:$0xff]
  %v505 = vld [vmem:[%s1 + $0xec8] sm:$0xff]
  %v506 = vld [vmem:[%s1 + $0xed0] sm:$0xff]
  %v507 = vld [vmem:[%s1 + $0xed8] sm:$0xff]
  %v508 = vld [vmem:[%s1 + $0xee0] sm:$0xff]
  %v509 = vld [vmem:[%s1 + $0xee8] sm:$0xff]
  %v510 = vld [vmem:[%s1 + $0xef0] sm:$0xff]
  %v511 = vld [vmem:[%s1 + $0xef8] sm:$0xff]
  %v512 = vld [vmem:[%s1 + $0xf00] sm:$0xff]
  %v513 = vld [vmem:[%s1 + $0xf08] sm:$0xff]
  %v514 = vld [vmem:[%s1 + $0xf10] sm:$0xff]
  %v515 = vld [vmem:[%s1 + $0xf18] sm:$0xff]
  %v516 = vld [vmem:[%s1 + $0xf20] sm:$0xff]
  %v517 = vld [vmem:[%s1 + $0xf28] sm:$0xff]
  %v518 = vld [vmem:[%s1 + $0xf30] sm:$0xff]
  %v519 = vld [vmem:[%s1 + $0xf38] sm:$0xff]
  %v520 = vld [vmem:[%s1 + $0xf40] sm:$0xff]
  %v521 = vld [vmem:[%s1 + $0xf48] sm:$0xff]
  %v522 = vld [vmem:[%s1 + $0xf50] sm:$0xff]
  %v523 = vld [vmem:[%s1 + $0xf58] sm:$0xff]
  %v524 = vld [vmem:[%s1 + $0xf60] sm:$0xff]
  %v525 = vld [vmem:[%s1 + $0xf68] sm:$0xff]
  %v526 = vld [vmem:[%s1 + $0xf70] sm:$0xff]
  %v527 = vld [vmem:[%s1 + $0xf78] sm:$0xff]
  %v528 = vld [vmem:[%s1 + $0xf80] sm:$0xff]
  %v529 = vld [vmem:[%s1 + $0xf88] sm:$0xff]
  %v530 = vld [vmem:[%s1 + $0xf90] sm:$0xff]
  %v531 = vld [vmem:[%s1 + $0xf98] sm:$0xff]
  %v532 = vld [vmem:[%s1 + $0xfa0] sm:$0xff]
  %v533 = vld [vmem:[%s1 + $0xfa8] sm:$0xff]
  %v534 = vld [vmem:[%s1 + $0xfb0] sm:$0xff]
  %v535 = vld [vmem:[%s1 + $0xfb8] sm:$0xff]
  %v536 = vld [vmem:[%s1 + $0xfc0] sm:$0xff]
  %v537 = vld [vmem:[%s1 + $0xfc8] sm:$0xff]
  %v538 = vld [vmem:[%s1 + $0xfd0] sm:$0xff]
  %v539 = vld [vmem:[%s1 + $0xfd8] sm:$0xff]
  %v540 = vld [vmem:[%s1 + $0xfe0] sm:$0xff]
  %v541 = vld [vmem:[%s1 + $0xfe8] sm:$0xff]
  %v542 = vld [vmem:[%s1 + $0xff0] sm:$0xff]
  %v543 = vld [vmem:[%s1 + $0xff8] sm:$0xff]
  %v544 = vld [vmem:[%s1 + $0x1000] sm:$0xff]
  %v545 = vld [vmem:[%s1 + $0x1008] sm:$0xff]
  %v546 = vld [vmem:[%s1 + $0x1010] sm:$0xff]
  %v547 = vld [vmem:[%s1 + $0x1018] sm:$0xff]
  %v548 = vld [vmem:[%s1 + $0x1020] sm:$0xff]
  %v549 = vld [vmem:[%s1 + $0x1028] sm:$0xff]
  %v550 = vld [vmem:[%s1 + $0x1030] sm:$0xff]
  %v551 = vld [vmem:[%s1 + $0x1038] sm:$0xff]
  %v552 = vld [vmem:[%s1 + $0x1040] sm:$0xff]
  %v553 = vld [vmem:[%s1 + $0x1048] sm:$0xff]
  %v554 = vld [vmem:[%s1 + $0x1050] sm:$0xff]
  %v555 = vld [vmem:[%s1 + $0x1058] sm:$0xff]
  %v556 = vld [vmem:[%s1 + $0x1060] sm:$0xff]
  %v557 = vld [vmem:[%s1 + $0x1068] sm:$0xff]
  %v558 = vld [vmem:[%s1 + $0x1070] sm:$0xff]
  %v559 = vld [vmem:[%s1 + $0x1078] sm:$0xff]
  %v560 = vld [vmem:[%s1 + $0x1080] sm:$0xff]
  %v561 = vld [vmem:[%s1 + $0x1088] sm:$0xff]
  %v562 = vld [vmem:[%s1 + $0x1090] sm:$0xff]
  %v563 = vld [vmem:[%s1 + $0x1098] sm:$0xff]
  %v564 = vld [vmem:[%s1 + $0x10a0] sm:$0xff]
  %v565 = vld [vmem:[%s1 + $0x10a8] sm:$0xff]
  %v566 = vld [vmem:[%s1 + $0x10b0] sm:$0xff]
  %v567 = vld [vmem:[%s1 + $0x10b8] sm:$0xff]
  %v568 = vld [vmem:[%s1 + $0x10c0] sm:$0xff]
  %v569 = vld [vmem:[%s1 + $0x10c8] sm:$0xff]
  %v570 = vld [vmem:[%s1 + $0x10d0] sm:$0xff]
  %v571 = vld [vmem:[%s1 + $0x10d8] sm:$0xff]
  %v572 = vld [vmem:[%s1 + $0x10e0] sm:$0xff]
  %v573 = vld [vmem:[%s1 + $0x10e8] sm:$0xff]
  %v574 = vld [vmem:[%s1 + $0x10f0] sm:$0xff]
  %v575 = vld [vmem:[%s1 + $0x10f8] sm:$0xff]
  %v576 = vld [vmem:[%s1 + $0x1100] sm:$0xff]
  %v577 = vld [vmem:[%s1 + $0x1108] sm:$0xff]
  %v578 = vld [vmem:[%s1 + $0x1110] sm:$0xff]
  %v579 = vld [vmem:[%s1 + $0x1118] sm:$0xff]
  %v580 = vld [vmem:[%s1 + $0x1120] sm:$0xff]
  %v581 = vld [vmem:[%s1 + $0x1128] sm:$0xff]
  %v582 = vld [vmem:[%s1 + $0x1130] sm:$0xff]
  %v583 = vld [vmem:[%s1 + $0x1138] sm:$0xff]
  %v584 = vld [vmem:[%s1 + $0x1140] sm:$0xff]
  %v585 = vld [vmem:[%s1 + $0x1148] sm:$0xff]
  %v586 = vld [vmem:[%s1 + $0x1150] sm:$0xff]
  %v587 = vld [vmem:[%s1 + $0x1158] sm:$0xff]
  %v588 = vld [vmem:[%s1 + $0x1160] sm:$0xff]
  %v589 = vld [vmem:[%s1 + $0x1168] sm:$0xff]
  %v590 = vld [vmem:[%s1 + $0x1170] sm:$0xff]
  %v591 = vld [vmem:[%s1 + $0x1178] sm:$0xff]
  %v592 = vld [vmem:[%s1 + $0x1180] sm:$0xff]
  %v593 = vld [vmem:[%s1 + $0x1188] sm:$0xff]
  %v594 = vld [vmem:[%s1 + $0x1190] sm:$0xff]
  %v595 = vld [vmem:[%s1 + $0x1198] sm:$0xff]
  %v596 = vld [vmem:[%s1 + $0x11a0] sm:$0xff]
  %v597 = vld [vmem:[%s1 + $0x11a8] sm:$0xff]
  %v598 = vld [vmem:[%s1 + $0x11b0] sm:$0xff]
  %v599 = vld [vmem:[%s1 + $0x11b8] sm:$0xff]
  %v600 = vld [vmem:[%s1 + $0x11c0] sm:$0xff]
  %v601 = vld [vmem:[%s1 + $0x11c8] sm:$0xff]
  %v602 = vld [vmem:[%s1 + $0x11d0] sm:$0xff]
  %v603 = vld [vmem:[%s1 + $0x11d8] sm:$0xff]
  %v604 = vld [vmem:[%s1 + $0x11e0] sm:$0xff]
  %v605 = vld [vmem:[%s1 + $0x11e8] sm:$0xff]
  %v606 = vld [vmem:[%s1 + $0x11f0] sm:$0xff]
  %v607 = vld [vmem:[%s1 + $0x11f8] sm:$0xff]
  %v608 = vld [vmem:[%s1 + $0x1200] sm:$0xff]
  %v609 = vld [vmem:[%s1 + $0x1208] sm:$0xff]
  %v610 = vld [vmem:[%s1 + $0x1210] sm:$0xff]
  %v611 = vld [vmem:[%s1 + $0x1218] sm:$0xff]
  %v612 = vld [vmem:[%s1 + $0x1220] sm:$0xff]
  %v613 = vld [vmem:[%s1 + $0x1228] sm:$0xff]
  %v614 = vld [vmem:[%s1 + $0x1230] sm:$0xff]
  %v615 = vld [vmem:[%s1 + $0x1238] sm:$0xff]
  %v616 = vld [vmem:[%s1 + $0x1240] sm:$0xff]
  %v617 = vld [vmem:[%s1 + $0x1248] sm:$0xff]
  %v618 = vld [vmem:[%s1 + $0x1250] sm:$0xff]
  %v619 = vld [vmem:[%s1 + $0x1258] sm:$0xff]
  %v620 = vld [vmem:[%s1 + $0x1260] sm:$0xff]
  %v621 = vld [vmem:[%s1 + $0x1268] sm:$0xff]
  %v622 = vld [vmem:[%s1 + $0x1270] sm:$0xff]
  %v623 = vld [vmem:[%s1 + $0x1278] sm:$0xff]
  %v624 = vld [vmem:[%s1 + $0x1280] sm:$0xff]
  %v625 = vld [vmem:[%s1 + $0x1288] sm:$0xff]
  %v626 = vld [vmem:[%s1 + $0x1290] sm:$0xff]
  %v627 = vld [vmem:[%s1 + $0x1298] sm:$0xff]
  %v628 = vld [vmem:[%s1 + $0x12a0] sm:$0xff]
  %v629 = vld [vmem:[%s1 + $0x12a8] sm:$0xff]
  %v630 = vld [vmem:[%s1 + $0x12b0] sm:$0xff]
  %v631 = vld [vmem:[%s1 + $0x12b8] sm:$0xff]
  %v632 = vld [vmem:[%s1 + $0x12c0] sm:$0xff]
  %v633 = vld [vmem:[%s1 + $0x12c8] sm:$0xff]
  %v634 = vld [vmem:[%s1 + $0x12d0] sm:$0xff]
  %v635 = vld [vmem:[%s1 + $0x12d8] sm:$0xff]
  %v636 = vld [vmem:[%s1 + $0x12e0] sm:$0xff]
  %v637 = vld [vmem:[%s1 + $0x12e8] sm:$0xff]
  %v638 = vld [vmem:[%s1 + $0x12f0] sm:$0xff]
  %v639 = vld [vmem:[%s1 + $0x12f8] sm:$0xff]
  %v640 = vld [vmem:[%s1 + $0x1300] sm:$0xff]
  %v641 = vld [vmem:[%s1 + $0x1308] sm:$0xff]
  %v642 = vld [vmem:[%s1 + $0x1310] sm:$0xff]
  %v643 = vld [vmem:[%s1 + $0x1318] sm:$0xff]
  %v644 = vld [vmem:[%s1 + $0x1320] sm:$0xff]
  %v645 = vld [vmem:[%s1 + $0x1328] sm:$0xff]
  %v646 = vld [vmem:[%s1 + $0x1330] sm:$0xff]
  %v647 = vld [vmem:[%s1 + $0x1338] sm:$0xff]
  %v648 = vld [vmem:[%s1 + $0x1340] sm:$0xff]
  %v649 = vld [vmem:[%s1 + $0x1348] sm:$0xff]
  %v650 = vld [vmem:[%s1 + $0x1350] sm:$0xff]
  %v651 = vld [vmem:[%s1 + $0x1358] sm:$0xff]
  %v652 = vld [vmem:[%s1 + $0x1360] sm:$0xff]
  %v653 = vld [vmem:[%s1 + $0x1368] sm:$0xff]
  %v654 = vld [vmem:[%s1 + $0x1370] sm:$0xff]
  %v655 = vld [vmem:[%s1 + $0x1378] sm:$0xff]
  %v656 = vld [vmem:[%s1 + $0x1380] sm:$0xff]
  %v657 = vld [vmem:[%s1 + $0x1388] sm:$0xff]
  %v658 = vld [vmem:[%s1 + $0x1390] sm:$0xff]
  %v659 = vld [vmem:[%s1 + $0x1398] sm:$0xff]
  %v660 = vld [vmem:[%s1 + $0x13a0] sm:$0xff]
  %v661 = vld [vmem:[%s1 + $0x13a8] sm:$0xff]
  %v662 = vld [vmem:[%s1 + $0x13b0] sm:$0xff]
  %v663 = vld [vmem:[%s1 + $0x13b8] sm:$0xff]
  %v664 = vld [vmem:[%s1 + $0x13c0] sm:$0xff]
  %v665 = vld [vmem:[%s1 + $0x13c8] sm:$0xff]
  %v666 = vld [vmem:[%s1 + $0x13d0] sm:$0xff]
  %v667 = vld [vmem:[%s1 + $0x13d8] sm:$0xff]
  %v668 = vld [vmem:[%s1 + $0x13e0] sm:$0xff]
  %v669 = vld [vmem:[%s1 + $0x13e8] sm:$0xff]
  %v670 = vld [vmem:[%s1 + $0x13f0] sm:$0xff]
  %v671 = vld [vmem:[%s1 + $0x13f8] sm:$0xff]
  %v672 = vld [vmem:[%s1 + $0x1400] sm:$0xff]
  %v673 = vld [vmem:[%s1 + $0x1408] sm:$0xff]
  %v674 = vld [vmem:[%s1 + $0x1410] sm:$0xff]
  %v675 = vld [vmem:[%s1 + $0x1418] sm:$0xff]
  %v676 = vld [vmem:[%s1 + $0x1420] sm:$0xff]
  %v677 = vld [vmem:[%s1 + $0x1428] sm:$0xff]
  %v678 = vld [vmem:[%s1 + $0x1430] sm:$0xff]
  %v679 = vld [vmem:[%s1 + $0x1438] sm:$0xff]
  %v680 = vld [vmem:[%s1 + $0x1440] sm:$0xff]
  %v681 = vld [vmem:[%s1 + $0x1448] sm:$0xff]
  %v682 = vld [vmem:[%s1 + $0x1450] sm:$0xff]
  %v683 = vld [vmem:[%s1 + $0x1458] sm:$0xff]
  %v684 = vld [vmem:[%s1 + $0x1460] sm:$0xff]
  %v685 = vld [vmem:[%s1 + $0x1468] sm:$0xff]
  %v686 = vld [vmem:[%s1 + $0x1470] sm:$0xff]
  %v687 = vld [vmem:[%s1 + $0x1478] sm:$0xff]
  %v688 = vld [vmem:[%s1 + $0x1480] sm:$0xff]
  %v689 = vld [vmem:[%s1 + $0x1488] sm:$0xff]
  %v690 = vld [vmem:[%s1 + $0x1490] sm:$0xff]
  %v691 = vld [vmem:[%s1 + $0x1498] sm:$0xff]
  %v692 = vld [vmem:[%s1 + $0x14a0] sm:$0xff]
  %v693 = vld [vmem:[%s1 + $0x14a8] sm:$0xff]
  %v694 = vld [vmem:[%s1 + $0x14b0] sm:$0xff]
  %v695 = vld [vmem:[%s1 + $0x14b8] sm:$0xff]
  %v696 = vld [vmem:[%s1 + $0x14c0] sm:$0xff]
  %v697 = vld [vmem:[%s1 + $0x14c8] sm:$0xff]
  %v698 = vld [vmem:[%s1 + $0x14d0] sm:$0xff]
  %v699 = vld [vmem:[%s1 + $0x14d8] sm:$0xff]
  %v700 = vld [vmem:[%s1 + $0x14e0] sm:$0xff]
  %v701 = vld [vmem:[%s1 + $0x14e8] sm:$0xff]
  %v702 = vld [vmem:[%s1 + $0x14f0] sm:$0xff]
  %v703 = vld [vmem:[%s1 + $0x14f8] sm:$0xff]
  %v704 = vld [vmem:[%s1 + $0x1500] sm:$0xff]
  %v705 = vld [vmem:[%s1 + $0x1508] sm:$0xff]
  %v706 = vld [vmem:[%s1 + $0x1510] sm:$0xff]
  %v707 = vld [vmem:[%s1 + $0x1518] sm:$0xff]
  %v708 = vld [vmem:[%s1 + $0x1520] sm:$0xff]
  %v709 = vld [vmem:[%s1 + $0x1528] sm:$0xff]
  %v710 = vld [vmem:[%s1 + $0x1530] sm:$0xff]
  %v711 = vld [vmem:[%s1 + $0x1538] sm:$0xff]
  %v712 = vld [vmem:[%s1 + $0x1540] sm:$0xff]
  %v713 = vld [vmem:[%s1 + $0x1548] sm:$0xff]
  %v714 = vld [vmem:[%s1 + $0x1550] sm:$0xff]
  %v715 = vld [vmem:[%s1 + $0x1558] sm:$0xff]
  %v716 = vld [vmem:[%s1 + $0x1560] sm:$0xff]
  %v717 = vld [vmem:[%s1 + $0x1568] sm:$0xff]
  %v718 = vld [vmem:[%s1 + $0x1570] sm:$0xff]
  %v719 = vld [vmem:[%s1 + $0x1578] sm:$0xff]
  %v720 = vld [vmem:[%s1 + $0x1580] sm:$0xff]
  %v721 = vld [vmem:[%s1 + $0x1588] sm:$0xff]
  %v722 = vld [vmem:[%s1 + $0x1590] sm:$0xff]
  %v723 = vld [vmem:[%s1 + $0x1598] sm:$0xff]
  %v724 = vld [vmem:[%s1 + $0x15a0] sm:$0xff]
  %v725 = vld [vmem:[%s1 + $0x15a8] sm:$0xff]
  %v726 = vld [vmem:[%s1 + $0x15b0] sm:$0xff]
  %v727 = vld [vmem:[%s1 + $0x15b8] sm:$0xff]
  %v728 = vld [vmem:[%s1 + $0x15c0] sm:$0xff]
  %v729 = vld [vmem:[%s1 + $0x15c8] sm:$0xff]
  %v730 = vld [vmem:[%s1 + $0x15d0] sm:$0xff]
  %v731 = vld [vmem:[%s1 + $0x15d8] sm:$0xff]
  %v732 = vld [vmem:[%s1 + $0x15e0] sm:$0xff]
  %v733 = vld [vmem:[%s1 + $0x15e8] sm:$0xff]
  %v734 = vld [vmem:[%s1 + $0x15f0] sm:$0xff]
  %v735 = vld [vmem:[%s1 + $0x15f8] sm:$0xff]
  %v736 = vld [vmem:[%s1 + $0x1600] sm:$0xff]
  %v737 = vld [vmem:[%s1 + $0x1608] sm:$0xff]
  %v738 = vld [vmem:[%s1 + $0x1610] sm:$0xff]
  %v739 = vld [vmem:[%s1 + $0x1618] sm:$0xff]
  %v740 = vld [vmem:[%s1 + $0x1620] sm:$0xff]
  %v741 = vld [vmem:[%s1 + $0x1628] sm:$0xff]
  %v742 = vld [vmem:[%s1 + $0x1630] sm:$0xff]
  %v743 = vld [vmem:[%s1 + $0x1638] sm:$0xff]
  %v744 = vld [vmem:[%s1 + $0x1640] sm:$0xff]
  %v745 = vld [vmem:[%s1 + $0x1648] sm:$0xff]
  %v746 = vld [vmem:[%s1 + $0x1650] sm:$0xff]
  %v747 = vld [vmem:[%s1 + $0x1658] sm:$0xff]
  %v748 = vld [vmem:[%s1 + $0x1660] sm:$0xff]
  %v749 = vld [vmem:[%s1 + $0x1668] sm:$0xff]
  %v750 = vld [vmem:[%s1 + $0x1670] sm:$0xff]
  %v751 = vld [vmem:[%s1 + $0x1678] sm:$0xff]
  %v752 = vld [vmem:[%s1 + $0x1680] sm:$0xff]
  %v753 = vld [vmem:[%s1 + $0x1688] sm:$0xff]
  %v754 = vld [vmem:[%s1 + $0x1690] sm:$0xff]
  %v755 = vld [vmem:[%s1 + $0x1698] sm:$0xff]
  %v756 = vld [vmem:[%s1 + $0x16a0] sm:$0xff]
  %v757 = vld [vmem:[%s1 + $0x16a8] sm:$0xff]
  %v758 = vld [vmem:[%s1 + $0x16b0] sm:$0xff]
  %v759 = vld [vmem:[%s1 + $0x16b8] sm:$0xff]
  %v760 = vld [vmem:[%s1 + $0x16c0] sm:$0xff]
  %v761 = vld [vmem:[%s1 + $0x16c8] sm:$0xff]
  %v762 = vld [vmem:[%s1 + $0x16d0] sm:$0xff]
  %v763 = vld [vmem:[%s1 + $0x16d8] sm:$0xff]
  %v764 = vld [vmem:[%s1 + $0x16e0] sm:$0xff]
  %v765 = vld [vmem:[%s1 + $0x16e8] sm:$0xff]
  %v766 = vld [vmem:[%s1 + $0x16f0] sm:$0xff]
  %v767 = vld [vmem:[%s1 + $0x16f8] sm:$0xff]
  %v768 = vld [vmem:[%s1 + $0x1700] sm:$0xff]
  %v769 = vld [vmem:[%s1 + $0x1708] sm:$0xff]
  %v770 = vld [vmem:[%s1 + $0x1710] sm:$0xff]
  %v771 = vld [vmem:[%s1 + $0x1718] sm:$0xff]
  %v772 = vld [vmem:[%s1 + $0x1720] sm:$0xff]
  %v773 = vld [vmem:[%s1 + $0x1728] sm:$0xff]
  %v774 = vld [vmem:[%s1 + $0x1730] sm:$0xff]
  %v775 = vld [vmem:[%s1 + $0x1738] sm:$0xff]
  %v776 = vld [vmem:[%s1 + $0x1740] sm:$0xff]
  %v777 = vld [vmem:[%s1 + $0x1748] sm:$0xff]
  %v778 = vld [vmem:[%s1 + $0x1750] sm:$0xff]
  %v779 = vld [vmem:[%s1 + $0x1758] sm:$0xff]
  %v780 = vld [vmem:[%s1 + $0x1760] sm:$0xff]
  %v781 = vld [vmem:[%s1 + $0x1768] sm:$0xff]
  %v782 = vld [vmem:[%s1 + $0x1770] sm:$0xff]
  %v783 = vld [vmem:[%s1 + $0x1778] sm:$0xff]
  %v784 = vld [vmem:[%s1 + $0x1780] sm:$0xff]
  %v785 = vld [vmem:[%s1 + $0x1788] sm:$0xff]
  %v786 = vld [vmem:[%s1 + $0x1790] sm:$0xff]
  %v787 = vld [vmem:[%s1 + $0x1798] sm:$0xff]
  %v788 = vld [vmem:[%s1 + $0x17a0] sm:$0xff]
  %v789 = vld [vmem:[%s1 + $0x17a8] sm:$0xff]
  %v790 = vld [vmem:[%s1 + $0x17b0] sm:$0xff]
  %v791 = vld [vmem:[%s1 + $0x17b8] sm:$0xff]
  %v792 = vld [vmem:[%s1 + $0x17c0] sm:$0xff]
  %v793 = vld [vmem:[%s1 + $0x17c8] sm:$0xff]
  %v794 = vld [vmem:[%s1 + $0x17d0] sm:$0xff]
  %v795 = vld [vmem:[%s1 + $0x17d8] sm:$0xff]
  %v796 = vld [vmem:[%s1 + $0x17e0] sm:$0xff]
  %v797 = vld [vmem:[%s1 + $0x17e8] sm:$0xff]
  %v798 = vld [vmem:[%s1 + $0x17f0] sm:$0xff]
  %v799 = vld [vmem:[%s1 + $0x17f8] sm:$0xff]
  %v800 = vld [vmem:[%s2] sm:$0xff]
  %v802 = vlaneseq
  %v803 = vshrl.u32 %v802, 7
  %v804 = vsub.s32 0, %v803
  %v805 = vrot.slane %v800, %v804
  %v806 = vlaneseq
  %v807 = vshrl.u32 %v806, 7
  %v808 = vsub.s32 1, %v807
  %v809 = vrot.slane %v800, %v808
  %v810 = vlaneseq
  %v811 = vshrl.u32 %v810, 7
  %v812 = vsub.s32 2, %v811
  %v813 = vrot.slane %v800, %v812
  %v814 = vlaneseq
  %v815 = vshrl.u32 %v814, 7
  %v816 = vsub.s32 3, %v815
  %v817 = vrot.slane %v800, %v816
  %v818 = vlaneseq
  %v819 = vshrl.u32 %v818, 7
  %v820 = vsub.s32 4, %v819
  %v821 = vrot.slane %v800, %v820
  %v822 = vlaneseq
  %v823 = vshrl.u32 %v822, 7
  %v824 = vsub.s32 5, %v823
  %v825 = vrot.slane %v800, %v824
  %v826 = vlaneseq
  %v827 = vshrl.u32 %v826, 7
  %v828 = vsub.s32 6, %v827
  %v829 = vrot.slane %v800, %v828
  %v830 = vlaneseq
  %v831 = vshrl.u32 %v830, 7
  %v832 = vsub.s32 7, %v831
  %v833 = vrot.slane %v800, %v832
  %842 = vmatprep.subr.mxu0 %v33
  %843 = vmatpush1.msra.mxu0 %v32
  %844 = vmatprep.subr.mxu0 %v41
  %845 = vmatpush1.msra.mxu0 %v40
  %846 = vmatprep.subr.mxu0 %v49
  %847 = vmatpush1.msra.mxu0 %v48
  %848 = vmatprep.subr.mxu0 %v57
  %849 = vmatpush1.msra.mxu0 %v56
  %850 = vmatprep.subr.mxu0 %v65
  %851 = vmatpush1.msra.mxu0 %v64
  %852 = vmatprep.subr.mxu0 %v73
  %853 = vmatpush1.msra.mxu0 %v72
  %854 = vmatprep.subr.mxu0 %v81
  %855 = vmatpush1.msra.mxu0 %v80
  %856 = vmatprep.subr.mxu0 %v89
  %857 = vmatpush1.msra.mxu0 %v88
  %858 = vmatprep.subr.mxu0 %v97
  %859 = vmatpush1.msra.mxu0 %v96
  %860 = vmatprep.subr.mxu0 %v105
  %861 = vmatpush1.msra.mxu0 %v104
  %862 = vmatprep.subr.mxu0 %v113
  %863 = vmatpush1.msra.mxu0 %v112
  %864 = vmatprep.subr.mxu0 %v121
  %865 = vmatpush1.msra.mxu0 %v120
  %866 = vmatprep.subr.mxu0 %v129
  %867 = vmatpush1.msra.mxu0 %v128
  %868 = vmatprep.subr.mxu0 %v137
  %869 = vmatpush1.msra.mxu0 %v136
  %870 = vmatprep.subr.mxu0 %v145
  %871 = vmatpush1.msra.mxu0 %v144
  %872 = vmatprep.subr.mxu0 %v153
  %873 = vmatpush1.msra.mxu0 %v152
  %874 = vmatprep.subr.mxu0 %v161
  %875 = vmatpush1.msra.mxu0 %v160
  %876 = vmatprep.subr.mxu0 %v169
  %877 = vmatpush1.msra.mxu0 %v168
  %878 = vmatprep.subr.mxu0 %v177
  %879 = vmatpush1.msra.mxu0 %v176
  %880 = vmatprep.subr.mxu0 %v185
  %881 = vmatpush1.msra.mxu0 %v184
  %882 = vmatprep.subr.mxu0 %v193
  %883 = vmatpush1.msra.mxu0 %v192
  %884 = vmatprep.subr.mxu0 %v201
  %885 = vmatpush1.msra.mxu0 %v200
  %886 = vmatprep.subr.mxu0 %v209
  %887 = vmatpush1.msra.mxu0 %v208
  %888 = vmatprep.subr.mxu0 %v217
  %889 = vmatpush1.msra.mxu0 %v216
  %890 = vmatprep.subr.mxu0 %v225
  %891 = vmatpush1.msra.mxu0 %v224
  %892 = vmatprep.subr.mxu0 %v233
  %893 = vmatpush1.msra.mxu0 %v232
  %894 = vmatprep.subr.mxu0 %v241
  %895 = vmatpush1.msra.mxu0 %v240
  %896 = vmatprep.subr.mxu0 %v249
  %897 = vmatpush1.msra.mxu0 %v248
  %898 = vmatprep.subr.mxu0 %v257
  %899 = vmatpush1.msra.mxu0 %v256
  %900 = vmatprep.subr.mxu0 %v265
  %901 = vmatpush1.msra.mxu0 %v264
  %902 = vmatprep.subr.mxu0 %v273
  %903 = vmatpush1.msra.mxu0 %v272
  %904 = vmatprep.subr.mxu0 %v281
  %905 = vmatpush1.msra.mxu0 %v280
  %906 = vmatprep.mubr.f32.mxu0 %v27
  %907 = vmatmul.mubr.f32.gmra.mrb[0].mxu0 %v26
  %v908 = vpop.f32.mrb[0].mxu0
  %v909 = vadd.f32 %v805, %v908
  %v910 = vpop.f32.mrb[0].mxu0
  %v911 = vadd.f32 %v809, %v910
  %912 = vdwg.mxu0
  %913 = vmatprep.subr.mxu0 %v289
  %914 = vmatpush1.msra.mxu0 %v288
  %915 = vmatprep.subr.mxu0 %v297
  %916 = vmatpush1.msra.mxu0 %v296
  %917 = vmatprep.subr.mxu0 %v305
  %918 = vmatpush1.msra.mxu0 %v304
  %919 = vmatprep.subr.mxu0 %v313
  %920 = vmatpush1.msra.mxu0 %v312
  %921 = vmatprep.subr.mxu0 %v321
  %922 = vmatpush1.msra.mxu0 %v320
  %923 = vmatprep.subr.mxu0 %v329
  %924 = vmatpush1.msra.mxu0 %v328
  %925 = vmatprep.subr.mxu0 %v337
  %926 = vmatpush1.msra.mxu0 %v336
  %927 = vmatprep.subr.mxu0 %v345
  %928 = vmatpush1.msra.mxu0 %v344
  %929 = vmatprep.subr.mxu0 %v353
  %930 = vmatpush1.msra.mxu0 %v352
  %931 = vmatprep.subr.mxu0 %v361
  %932 = vmatpush1.msra.mxu0 %v360
  %933 = vmatprep.subr.mxu0 %v369
  %934 = vmatpush1.msra.mxu0 %v368
  %935 = vmatprep.subr.mxu0 %v377
  %936 = vmatpush1.msra.mxu0 %v376
  %937 = vmatprep.subr.mxu0 %v385
  %938 = vmatpush1.msra.mxu0 %v384
  %939 = vmatprep.subr.mxu0 %v393
  %940 = vmatpush1.msra.mxu0 %v392
  %941 = vmatprep.subr.mxu0 %v401
  %942 = vmatpush1.msra.mxu0 %v400
  %943 = vmatprep.subr.mxu0 %v409
  %944 = vmatpush1.msra.mxu0 %v408
  %945 = vmatprep.subr.mxu0 %v417
  %946 = vmatpush1.msra.mxu0 %v416
  %947 = vmatprep.subr.mxu0 %v425
  %948 = vmatpush1.msra.mxu0 %v424
  %949 = vmatprep.subr.mxu0 %v433
  %950 = vmatpush1.msra.mxu0 %v432
  %951 = vmatprep.subr.mxu0 %v441
  %952 = vmatpush1.msra.mxu0 %v440
  %953 = vmatprep.subr.mxu0 %v449
  %954 = vmatpush1.msra.mxu0 %v448
  %955 = vmatprep.subr.mxu0 %v457
  %956 = vmatpush1.msra.mxu0 %v456
  %957 = vmatprep.subr.mxu0 %v465
  %958 = vmatpush1.msra.mxu0 %v464
  %959 = vmatprep.subr.mxu0 %v473
  %960 = vmatpush1.msra.mxu0 %v472
  %961 = vmatprep.subr.mxu0 %v481
  %962 = vmatpush1.msra.mxu0 %v480
  %963 = vmatprep.subr.mxu0 %v489
  %964 = vmatpush1.msra.mxu0 %v488
  %965 = vmatprep.subr.mxu0 %v497
  %966 = vmatpush1.msra.mxu0 %v496
  %967 = vmatprep.subr.mxu0 %v505
  %968 = vmatpush1.msra.mxu0 %v504
  %969 = vmatprep.subr.mxu0 %v513
  %970 = vmatpush1.msra.mxu0 %v512
  %971 = vmatprep.subr.mxu0 %v521
  %972 = vmatpush1.msra.mxu0 %v520
  %973 = vmatprep.subr.mxu0 %v529
  %974 = vmatpush1.msra.mxu0 %v528
  %975 = vmatprep.subr.mxu0 %v537
  %976 = vmatpush1.msra.mxu0 %v536
  %977 = vmatprep.mubr.f32.mxu0 %v29
  %978 = vmatmul.mubr.f32.gmra.mrb[0].mxu0 %v28
  %v979 = vpop.f32.mrb[0].mxu0
  %v980 = vadd.f32 %v909, %v979
  %v981 = vpop.f32.mrb[0].mxu0
  %v982 = vadd.f32 %v911, %v981
  %983 = vdwg.mxu0
  %984 = vmatprep.subr.mxu0 %v545
  %985 = vmatpush1.msra.mxu0 %v544
  %986 = vmatprep.subr.mxu0 %v553
  %987 = vmatpush1.msra.mxu0 %v552
  %988 = vmatprep.subr.mxu0 %v561
  %989 = vmatpush1.msra.mxu0 %v560
  %990 = vmatprep.subr.mxu0 %v569
  %991 = vmatpush1.msra.mxu0 %v568
  %992 = vmatprep.subr.mxu0 %v577
  %993 = vmatpush1.msra.mxu0 %v576
  %994 = vmatprep.subr.mxu0 %v585
  %995 = vmatpush1.msra.mxu0 %v584
  %996 = vmatprep.subr.mxu0 %v593
  %997 = vmatpush1.msra.mxu0 %v592
  %998 = vmatprep.subr.mxu0 %v601
  %999 = vmatpush1.msra.mxu0 %v600
  %1000 = vmatprep.subr.mxu0 %v609
  %1001 = vmatpush1.msra.mxu0 %v608
  %1002 = vmatprep.subr.mxu0 %v617
  %1003 = vmatpush1.msra.mxu0 %v616
  %1004 = vmatprep.subr.mxu0 %v625
  %1005 = vmatpush1.msra.mxu0 %v624
  %1006 = vmatprep.subr.mxu0 %v633
  %1007 = vmatpush1.msra.mxu0 %v632
  %1008 = vmatprep.subr.mxu0 %v641
  %1009 = vmatpush1.msra.mxu0 %v640
  %1010 = vmatprep.subr.mxu0 %v649
  %1011 = vmatpush1.msra.mxu0 %v648
  %1012 = vmatprep.subr.mxu0 %v657
  %1013 = vmatpush1.msra.mxu0 %v656
  %1014 = vmatprep.subr.mxu0 %v665
  %1015 = vmatpush1.msra.mxu0 %v664
  %1016 = vmatprep.subr.mxu0 %v673
  %1017 = vmatpush1.msra.mxu0 %v672
  %1018 = vmatprep.subr.mxu0 %v681
  %1019 = vmatpush1.msra.mxu0 %v680
  %1020 = vmatprep.subr.mxu0 %v689
  %1021 = vmatpush1.msra.mxu0 %v688
  %1022 = vmatprep.subr.mxu0 %v697
  %1023 = vmatpush1.msra.mxu0 %v696
  %1024 = vmatprep.subr.mxu0 %v705
  %1025 = vmatpush1.msra.mxu0 %v704
  %1026 = vmatprep.subr.mxu0 %v713
  %1027 = vmatpush1.msra.mxu0 %v712
  %1028 = vmatprep.subr.mxu0 %v721
  %1029 = vmatpush1.msra.mxu0 %v720
  %1030 = vmatprep.subr.mxu0 %v729
  %1031 = vmatpush1.msra.mxu0 %v728
  %1032 = vmatprep.subr.mxu0 %v737
  %1033 = vmatpush1.msra.mxu0 %v736
  %1034 = vmatprep.subr.mxu0 %v745
  %1035 = vmatpush1.msra.mxu0 %v744
  %1036 = vmatprep.subr.mxu0 %v753
  %1037 = vmatpush1.msra.mxu0 %v752
  %1038 = vmatprep.subr.mxu0 %v761
  %1039 = vmatpush1.msra.mxu0 %v760
  %1040 = vmatprep.subr.mxu0 %v769
  %1041 = vmatpush1.msra.mxu0 %v768
  %1042 = vmatprep.subr.mxu0 %v777
  %1043 = vmatpush1.msra.mxu0 %v776
  %1044 = vmatprep.subr.mxu0 %v785
  %1045 = vmatpush1.msra.mxu0 %v784
  %1046 = vmatprep.subr.mxu0 %v793
  %1047 = vmatpush1.msra.mxu0 %v792
  %1048 = vmatprep.mubr.f32.mxu0 %v31
  %1049 = vmatmul.mubr.f32.gmra.mrb[0].mxu0 %v30
  %v1050 = vpop.f32.mrb[0].mxu0
  %v1051 = vadd.f32 %v980, %v1050
  %v1052 = vpop.f32.mrb[0].mxu0
  %v1053 = vadd.f32 %v982, %v1052
  %1054 = vdwg.mxu0
  %1055 = vmatprep.subr.mxu0 %v35
  %1056 = vmatpush1.msra.mxu0 %v34
  %1057 = vmatprep.subr.mxu0 %v43
  %1058 = vmatpush1.msra.mxu0 %v42
  %1059 = vmatprep.subr.mxu0 %v51
  %1060 = vmatpush1.msra.mxu0 %v50
  %1061 = vmatprep.subr.mxu0 %v59
  %1062 = vmatpush1.msra.mxu0 %v58
  %1063 = vmatprep.subr.mxu0 %v67
  %1064 = vmatpush1.msra.mxu0 %v66
  %1065 = vmatprep.subr.mxu0 %v75
  %1066 = vmatpush1.msra.mxu0 %v74
  %1067 = vmatprep.subr.mxu0 %v83
  %1068 = vmatpush1.msra.mxu0 %v82
  %1069 = vmatprep.subr.mxu0 %v91
  %1070 = vmatpush1.msra.mxu0 %v90
  %1071 = vmatprep.subr.mxu0 %v99
  %1072 = vmatpush1.msra.mxu0 %v98
  %1073 = vmatprep.subr.mxu0 %v107
  %1074 = vmatpush1.msra.mxu0 %v106
  %1075 = vmatprep.subr.mxu0 %v115
  %1076 = vmatpush1.msra.mxu0 %v114
  %1077 = vmatprep.subr.mxu0 %v123
  %1078 = vmatpush1.msra.mxu0 %v122
  %1079 = vmatprep.subr.mxu0 %v131
  %1080 = vmatpush1.msra.mxu0 %v130
  %1081 = vmatprep.subr.mxu0 %v139
  %1082 = vmatpush1.msra.mxu0 %v138
  %1083 = vmatprep.subr.mxu0 %v147
  %1084 = vmatpush1.msra.mxu0 %v146
  %1085 = vmatprep.subr.mxu0 %v155
  %1086 = vmatpush1.msra.mxu0 %v154
  %1087 = vmatprep.subr.mxu0 %v163
  %1088 = vmatpush1.msra.mxu0 %v162
  %1089 = vmatprep.subr.mxu0 %v171
  %1090 = vmatpush1.msra.mxu0 %v170
  %1091 = vmatprep.subr.mxu0 %v179
  %1092 = vmatpush1.msra.mxu0 %v178
  %1093 = vmatprep.subr.mxu0 %v187
  %1094 = vmatpush1.msra.mxu0 %v186
  %1095 = vmatprep.subr.mxu0 %v195
  %1096 = vmatpush1.msra.mxu0 %v194
  %1097 = vmatprep.subr.mxu0 %v203
  %1098 = vmatpush1.msra.mxu0 %v202
  %1099 = vmatprep.subr.mxu0 %v211
  %1100 = vmatpush1.msra.mxu0 %v210
  %1101 = vmatprep.subr.mxu0 %v219
  %1102 = vmatpush1.msra.mxu0 %v218
  %1103 = vmatprep.subr.mxu0 %v227
  %1104 = vmatpush1.msra.mxu0 %v226
  %1105 = vmatprep.subr.mxu0 %v235
  %1106 = vmatpush1.msra.mxu0 %v234
  %1107 = vmatprep.subr.mxu0 %v243
  %1108 = vmatpush1.msra.mxu0 %v242
  %1109 = vmatprep.subr.mxu0 %v251
  %1110 = vmatpush1.msra.mxu0 %v250
  %1111 = vmatprep.subr.mxu0 %v259
  %1112 = vmatpush1.msra.mxu0 %v258
  %1113 = vmatprep.subr.mxu0 %v267
  %1114 = vmatpush1.msra.mxu0 %v266
  %1115 = vmatprep.subr.mxu0 %v275
  %1116 = vmatpush1.msra.mxu0 %v274
  %1117 = vmatprep.subr.mxu0 %v283
  %1118 = vmatpush1.msra.mxu0 %v282
  %1119 = vmatprep.mubr.f32.mxu0 %v27
  %1120 = vmatmul.mubr.f32.gmra.mrb[0].mxu0 %v26
  %v1121 = vpop.f32.mrb[0].mxu0
  %v1122 = vadd.f32 %v813, %v1121
  %v1123 = vpop.f32.mrb[0].mxu0
  %v1124 = vadd.f32 %v817, %v1123
  %1125 = vdwg.mxu0
  %1126 = vmatprep.subr.mxu0 %v291
  %1127 = vmatpush1.msra.mxu0 %v290
  %1128 = vmatprep.subr.mxu0 %v299
  %1129 = vmatpush1.msra.mxu0 %v298
  %1130 = vmatprep.subr.mxu0 %v307
  %1131 = vmatpush1.msra.mxu0 %v306
  %1132 = vmatprep.subr.mxu0 %v315
  %1133 = vmatpush1.msra.mxu0 %v314
  %1134 = vmatprep.subr.mxu0 %v323
  %1135 = vmatpush1.msra.mxu0 %v322
  %1136 = vmatprep.subr.mxu0 %v331
  %1137 = vmatpush1.msra.mxu0 %v330
  %1138 = vmatprep.subr.mxu0 %v339
  %1139 = vmatpush1.msra.mxu0 %v338
  %1140 = vmatprep.subr.mxu0 %v347
  %1141 = vmatpush1.msra.mxu0 %v346
  %1142 = vmatprep.subr.mxu0 %v355
  %1143 = vmatpush1.msra.mxu0 %v354
  %1144 = vmatprep.subr.mxu0 %v363
  %1145 = vmatpush1.msra.mxu0 %v362
  %1146 = vmatprep.subr.mxu0 %v371
  %1147 = vmatpush1.msra.mxu0 %v370
  %1148 = vmatprep.subr.mxu0 %v379
  %1149 = vmatpush1.msra.mxu0 %v378
  %1150 = vmatprep.subr.mxu0 %v387
  %1151 = vmatpush1.msra.mxu0 %v386
  %1152 = vmatprep.subr.mxu0 %v395
  %1153 = vmatpush1.msra.mxu0 %v394
  %1154 = vmatprep.subr.mxu0 %v403
  %1155 = vmatpush1.msra.mxu0 %v402
  %1156 = vmatprep.subr.mxu0 %v411
  %1157 = vmatpush1.msra.mxu0 %v410
  %1158 = vmatprep.subr.mxu0 %v419
  %1159 = vmatpush1.msra.mxu0 %v418
  %1160 = vmatprep.subr.mxu0 %v427
  %1161 = vmatpush1.msra.mxu0 %v426
  %1162 = vmatprep.subr.mxu0 %v435
  %1163 = vmatpush1.msra.mxu0 %v434
  %1164 = vmatprep.subr.mxu0 %v443
  %1165 = vmatpush1.msra.mxu0 %v442
  %1166 = vmatprep.subr.mxu0 %v451
  %1167 = vmatpush1.msra.mxu0 %v450
  %1168 = vmatprep.subr.mxu0 %v459
  %1169 = vmatpush1.msra.mxu0 %v458
  %1170 = vmatprep.subr.mxu0 %v467
  %1171 = vmatpush1.msra.mxu0 %v466
  %1172 = vmatprep.subr.mxu0 %v475
  %1173 = vmatpush1.msra.mxu0 %v474
  %1174 = vmatprep.subr.mxu0 %v483
  %1175 = vmatpush1.msra.mxu0 %v482
  %1176 = vmatprep.subr.mxu0 %v491
  %1177 = vmatpush1.msra.mxu0 %v490
  %1178 = vmatprep.subr.mxu0 %v499
  %1179 = vmatpush1.msra.mxu0 %v498
  %1180 = vmatprep.subr.mxu0 %v507
  %1181 = vmatpush1.msra.mxu0 %v506
  %1182 = vmatprep.subr.mxu0 %v515
  %1183 = vmatpush1.msra.mxu0 %v514
  %1184 = vmatprep.subr.mxu0 %v523
  %1185 = vmatpush1.msra.mxu0 %v522
  %1186 = vmatprep.subr.mxu0 %v531
  %1187 = vmatpush1.msra.mxu0 %v530
  %1188 = vmatprep.subr.mxu0 %v539
  %1189 = vmatpush1.msra.mxu0 %v538
  %1190 = vmatprep.mubr.f32.mxu0 %v29
  %1191 = vmatmul.mubr.f32.gmra.mrb[0].mxu0 %v28
  %v1192 = vpop.f32.mrb[0].mxu0
  %v1193 = vadd.f32 %v1122, %v1192
  %v1194 = vpop.f32.mrb[0].mxu0
  %v1195 = vadd.f32 %v1124, %v1194
  %1196 = vdwg.mxu0
  %1197 = vmatprep.subr.mxu0 %v547
  %1198 = vmatpush1.msra.mxu0 %v546
  %1199 = vmatprep.subr.mxu0 %v555
  %1200 = vmatpush1.msra.mxu0 %v554
  %1201 = vmatprep.subr.mxu0 %v563
  %1202 = vmatpush1.msra.mxu0 %v562
  %1203 = vmatprep.subr.mxu0 %v571
  %1204 = vmatpush1.msra.mxu0 %v570
  %1205 = vmatprep.subr.mxu0 %v579
  %1206 = vmatpush1.msra.mxu0 %v578
  %1207 = vmatprep.subr.mxu0 %v587
  %1208 = vmatpush1.msra.mxu0 %v586
  %1209 = vmatprep.subr.mxu0 %v595
  %1210 = vmatpush1.msra.mxu0 %v594
  %1211 = vmatprep.subr.mxu0 %v603
  %1212 = vmatpush1.msra.mxu0 %v602
  %1213 = vmatprep.subr.mxu0 %v611
  %1214 = vmatpush1.msra.mxu0 %v610
  %1215 = vmatprep.subr.mxu0 %v619
  %1216 = vmatpush1.msra.mxu0 %v618
  %1217 = vmatprep.subr.mxu0 %v627
  %1218 = vmatpush1.msra.mxu0 %v626
  %1219 = vmatprep.subr.mxu0 %v635
  %1220 = vmatpush1.msra.mxu0 %v634
  %1221 = vmatprep.subr.mxu0 %v643
  %1222 = vmatpush1.msra.mxu0 %v642
  %1223 = vmatprep.subr.mxu0 %v651
  %1224 = vmatpush1.msra.mxu0 %v650
  %1225 = vmatprep.subr.mxu0 %v659
  %1226 = vmatpush1.msra.mxu0 %v658
  %1227 = vmatprep.subr.mxu0 %v667
  %1228 = vmatpush1.msra.mxu0 %v666
  %1229 = vmatprep.subr.mxu0 %v675
  %1230 = vmatpush1.msra.mxu0 %v674
  %1231 = vmatprep.subr.mxu0 %v683
  %1232 = vmatpush1.msra.mxu0 %v682
  %1233 = vmatprep.subr.mxu0 %v691
  %1234 = vmatpush1.msra.mxu0 %v690
  %1235 = vmatprep.subr.mxu0 %v699
  %1236 = vmatpush1.msra.mxu0 %v698
  %1237 = vmatprep.subr.mxu0 %v707
  %1238 = vmatpush1.msra.mxu0 %v706
  %1239 = vmatprep.subr.mxu0 %v715
  %1240 = vmatpush1.msra.mxu0 %v714
  %1241 = vmatprep.subr.mxu0 %v723
  %1242 = vmatpush1.msra.mxu0 %v722
  %1243 = vmatprep.subr.mxu0 %v731
  %1244 = vmatpush1.msra.mxu0 %v730
  %1245 = vmatprep.subr.mxu0 %v739
  %1246 = vmatpush1.msra.mxu0 %v738
  %1247 = vmatprep.subr.mxu0 %v747
  %1248 = vmatpush1.msra.mxu0 %v746
  %1249 = vmatprep.subr.mxu0 %v755
  %1250 = vmatpush1.msra.mxu0 %v754
  %1251 = vmatprep.subr.mxu0 %v763
  %1252 = vmatpush1.msra.mxu0 %v762
  %1253 = vmatprep.subr.mxu0 %v771
  %1254 = vmatpush1.msra.mxu0 %v770
  %1255 = vmatprep.subr.mxu0 %v779
  %1256 = vmatpush1.msra.mxu0 %v778
  %1257 = vmatprep.subr.mxu0 %v787
  %1258 = vmatpush1.msra.mxu0 %v786
  %1259 = vmatprep.subr.mxu0 %v795
  %1260 = vmatpush1.msra.mxu0 %v794
  %1261 = vmatprep.mubr.f32.mxu0 %v31
  %1262 = vmatmul.mubr.f32.gmra.mrb[0].mxu0 %v30
  %v1263 = vpop.f32.mrb[0].mxu0
  %v1264 = vadd.f32 %v1193, %v1263
  %v1265 = vpop.f32.mrb[0].mxu0
  %v1266 = vadd.f32 %v1195, %v1265
  %1267 = vdwg.mxu0
  %1268 = vmatprep.subr.mxu0 %v37
  %1269 = vmatpush1.msra.mxu0 %v36
  %1270 = vmatprep.subr.mxu0 %v45
  %1271 = vmatpush1.msra.mxu0 %v44
  %1272 = vmatprep.subr.mxu0 %v53
  %1273 = vmatpush1.msra.mxu0 %v52
  %1274 = vmatprep.subr.mxu0 %v61
  %1275 = vmatpush1.msra.mxu0 %v60
  %1276 = vmatprep.subr.mxu0 %v69
  %1277 = vmatpush1.msra.mxu0 %v68
  %1278 = vmatprep.subr.mxu0 %v77
  %1279 = vmatpush1.msra.mxu0 %v76
  %1280 = vmatprep.subr.mxu0 %v85
  %1281 = vmatpush1.msra.mxu0 %v84
  %1282 = vmatprep.subr.mxu0 %v93
  %1283 = vmatpush1.msra.mxu0 %v92
  %1284 = vmatprep.subr.mxu0 %v101
  %1285 = vmatpush1.msra.mxu0 %v100
  %1286 = vmatprep.subr.mxu0 %v109
  %1287 = vmatpush1.msra.mxu0 %v108
  %1288 = vmatprep.subr.mxu0 %v117
  %1289 = vmatpush1.msra.mxu0 %v116
  %1290 = vmatprep.subr.mxu0 %v125
  %1291 = vmatpush1.msra.mxu0 %v124
  %1292 = vmatprep.subr.mxu0 %v133
  %1293 = vmatpush1.msra.mxu0 %v132
  %1294 = vmatprep.subr.mxu0 %v141
  %1295 = vmatpush1.msra.mxu0 %v140
  %1296 = vmatprep.subr.mxu0 %v149
  %1297 = vmatpush1.msra.mxu0 %v148
  %1298 = vmatprep.subr.mxu0 %v157
  %1299 = vmatpush1.msra.mxu0 %v156
  %1300 = vmatprep.subr.mxu0 %v165
  %1301 = vmatpush1.msra.mxu0 %v164
  %1302 = vmatprep.subr.mxu0 %v173
  %1303 = vmatpush1.msra.mxu0 %v172
  %1304 = vmatprep.subr.mxu0 %v181
  %1305 = vmatpush1.msra.mxu0 %v180
  %1306 = vmatprep.subr.mxu0 %v189
  %1307 = vmatpush1.msra.mxu0 %v188
  %1308 = vmatprep.subr.mxu0 %v197
  %1309 = vmatpush1.msra.mxu0 %v196
  %1310 = vmatprep.subr.mxu0 %v205
  %1311 = vmatpush1.msra.mxu0 %v204
  %1312 = vmatprep.subr.mxu0 %v213
  %1313 = vmatpush1.msra.mxu0 %v212
  %1314 = vmatprep.subr.mxu0 %v221
  %1315 = vmatpush1.msra.mxu0 %v220
  %1316 = vmatprep.subr.mxu0 %v229
  %1317 = vmatpush1.msra.mxu0 %v228
  %1318 = vmatprep.subr.mxu0 %v237
  %1319 = vmatpush1.msra.mxu0 %v236
  %1320 = vmatprep.subr.mxu0 %v245
  %1321 = vmatpush1.msra.mxu0 %v244
  %1322 = vmatprep.subr.mxu0 %v253
  %1323 = vmatpush1.msra.mxu0 %v252
  %1324 = vmatprep.subr.mxu0 %v261
  %1325 = vmatpush1.msra.mxu0 %v260
  %1326 = vmatprep.subr.mxu0 %v269
  %1327 = vmatpush1.msra.mxu0 %v268
  %1328 = vmatprep.subr.mxu0 %v277
  %1329 = vmatpush1.msra.mxu0 %v276
  %1330 = vmatprep.subr.mxu0 %v285
  %1331 = vmatpush1.msra.mxu0 %v284
  %1332 = vmatprep.mubr.f32.mxu0 %v27
  %1333 = vmatmul.mubr.f32.gmra.mrb[0].mxu0 %v26
  %v1334 = vpop.f32.mrb[0].mxu0
  %v1335 = vadd.f32 %v821, %v1334
  %v1336 = vpop.f32.mrb[0].mxu0
  %v1337 = vadd.f32 %v825, %v1336
  %1338 = vdwg.mxu0
  %1339 = vmatprep.subr.mxu0 %v293
  %1340 = vmatpush1.msra.mxu0 %v292
  %1341 = vmatprep.subr.mxu0 %v301
  %1342 = vmatpush1.msra.mxu0 %v300
  %1343 = vmatprep.subr.mxu0 %v309
  %1344 = vmatpush1.msra.mxu0 %v308
  %1345 = vmatprep.subr.mxu0 %v317
  %1346 = vmatpush1.msra.mxu0 %v316
  %1347 = vmatprep.subr.mxu0 %v325
  %1348 = vmatpush1.msra.mxu0 %v324
  %1349 = vmatprep.subr.mxu0 %v333
  %1350 = vmatpush1.msra.mxu0 %v332
  %1351 = vmatprep.subr.mxu0 %v341
  %1352 = vmatpush1.msra.mxu0 %v340
  %1353 = vmatprep.subr.mxu0 %v349
  %1354 = vmatpush1.msra.mxu0 %v348
  %1355 = vmatprep.subr.mxu0 %v357
  %1356 = vmatpush1.msra.mxu0 %v356
  %1357 = vmatprep.subr.mxu0 %v365
  %1358 = vmatpush1.msra.mxu0 %v364
  %1359 = vmatprep.subr.mxu0 %v373
  %1360 = vmatpush1.msra.mxu0 %v372
  %1361 = vmatprep.subr.mxu0 %v381
  %1362 = vmatpush1.msra.mxu0 %v380
  %1363 = vmatprep.subr.mxu0 %v389
  %1364 = vmatpush1.msra.mxu0 %v388
  %1365 = vmatprep.subr.mxu0 %v397
  %1366 = vmatpush1.msra.mxu0 %v396
  %1367 = vmatprep.subr.mxu0 %v405
  %1368 = vmatpush1.msra.mxu0 %v404
  %1369 = vmatprep.subr.mxu0 %v413
  %1370 = vmatpush1.msra.mxu0 %v412
  %1371 = vmatprep.subr.mxu0 %v421
  %1372 = vmatpush1.msra.mxu0 %v420
  %1373 = vmatprep.subr.mxu0 %v429
  %1374 = vmatpush1.msra.mxu0 %v428
  %1375 = vmatprep.subr.mxu0 %v437
  %1376 = vmatpush1.msra.mxu0 %v436
  %1377 = vmatprep.subr.mxu0 %v445
  %1378 = vmatpush1.msra.mxu0 %v444
  %1379 = vmatprep.subr.mxu0 %v453
  %1380 = vmatpush1.msra.mxu0 %v452
  %1381 = vmatprep.subr.mxu0 %v461
  %1382 = vmatpush1.msra.mxu0 %v460
  %1383 = vmatprep.subr.mxu0 %v469
  %1384 = vmatpush1.msra.mxu0 %v468
  %1385 = vmatprep.subr.mxu0 %v477
  %1386 = vmatpush1.msra.mxu0 %v476
  %1387 = vmatprep.subr.mxu0 %v485
  %1388 = vmatpush1.msra.mxu0 %v484
  %1389 = vmatprep.subr.mxu0 %v493
  %1390 = vmatpush1.msra.mxu0 %v492
  %1391 = vmatprep.subr.mxu0 %v501
  %1392 = vmatpush1.msra.mxu0 %v500
  %1393 = vmatprep.subr.mxu0 %v509
  %1394 = vmatpush1.msra.mxu0 %v508
  %1395 = vmatprep.subr.mxu0 %v517
  %1396 = vmatpush1.msra.mxu0 %v516
  %1397 = vmatprep.subr.mxu0 %v525
  %1398 = vmatpush1.msra.mxu0 %v524
  %1399 = vmatprep.subr.mxu0 %v533
  %1400 = vmatpush1.msra.mxu0 %v532
  %1401 = vmatprep.subr.mxu0 %v541
  %1402 = vmatpush1.msra.mxu0 %v540
  %1403 = vmatprep.mubr.f32.mxu0 %v29
  %1404 = vmatmul.mubr.f32.gmra.mrb[0].mxu0 %v28
  %v1405 = vpop.f32.mrb[0].mxu0
  %v1406 = vadd.f32 %v1335, %v1405
  %v1407 = vpop.f32.mrb[0].mxu0
  %v1408 = vadd.f32 %v1337, %v1407
  %1409 = vdwg.mxu0
  %1410 = vmatprep.subr.mxu0 %v549
  %1411 = vmatpush1.msra.mxu0 %v548
  %1412 = vmatprep.subr.mxu0 %v557
  %1413 = vmatpush1.msra.mxu0 %v556
  %1414 = vmatprep.subr.mxu0 %v565
  %1415 = vmatpush1.msra.mxu0 %v564
  %1416 = vmatprep.subr.mxu0 %v573
  %1417 = vmatpush1.msra.mxu0 %v572
  %1418 = vmatprep.subr.mxu0 %v581
  %1419 = vmatpush1.msra.mxu0 %v580
  %1420 = vmatprep.subr.mxu0 %v589
  %1421 = vmatpush1.msra.mxu0 %v588
  %1422 = vmatprep.subr.mxu0 %v597
  %1423 = vmatpush1.msra.mxu0 %v596
  %1424 = vmatprep.subr.mxu0 %v605
  %1425 = vmatpush1.msra.mxu0 %v604
  %1426 = vmatprep.subr.mxu0 %v613
  %1427 = vmatpush1.msra.mxu0 %v612
  %1428 = vmatprep.subr.mxu0 %v621
  %1429 = vmatpush1.msra.mxu0 %v620
  %1430 = vmatprep.subr.mxu0 %v629
  %1431 = vmatpush1.msra.mxu0 %v628
  %1432 = vmatprep.subr.mxu0 %v637
  %1433 = vmatpush1.msra.mxu0 %v636
  %1434 = vmatprep.subr.mxu0 %v645
  %1435 = vmatpush1.msra.mxu0 %v644
  %1436 = vmatprep.subr.mxu0 %v653
  %1437 = vmatpush1.msra.mxu0 %v652
  %1438 = vmatprep.subr.mxu0 %v661
  %1439 = vmatpush1.msra.mxu0 %v660
  %1440 = vmatprep.subr.mxu0 %v669
  %1441 = vmatpush1.msra.mxu0 %v668
  %1442 = vmatprep.subr.mxu0 %v677
  %1443 = vmatpush1.msra.mxu0 %v676
  %1444 = vmatprep.subr.mxu0 %v685
  %1445 = vmatpush1.msra.mxu0 %v684
  %1446 = vmatprep.subr.mxu0 %v693
  %1447 = vmatpush1.msra.mxu0 %v692
  %1448 = vmatprep.subr.mxu0 %v701
  %1449 = vmatpush1.msra.mxu0 %v700
  %1450 = vmatprep.subr.mxu0 %v709
  %1451 = vmatpush1.msra.mxu0 %v708
  %1452 = vmatprep.subr.mxu0 %v717
  %1453 = vmatpush1.msra.mxu0 %v716
  %1454 = vmatprep.subr.mxu0 %v725
  %1455 = vmatpush1.msra.mxu0 %v724
  %1456 = vmatprep.subr.mxu0 %v733
  %1457 = vmatpush1.msra.mxu0 %v732
  %1458 = vmatprep.subr.mxu0 %v741
  %1459 = vmatpush1.msra.mxu0 %v740
  %1460 = vmatprep.subr.mxu0 %v749
  %1461 = vmatpush1.msra.mxu0 %v748
  %1462 = vmatprep.subr.mxu0 %v757
  %1463 = vmatpush1.msra.mxu0 %v756
  %1464 = vmatprep.subr.mxu0 %v765
  %1465 = vmatpush1.msra.mxu0 %v764
  %1466 = vmatprep.subr.mxu0 %v773
  %1467 = vmatpush1.msra.mxu0 %v772
  %1468 = vmatprep.subr.mxu0 %v781
  %1469 = vmatpush1.msra.mxu0 %v780
  %1470 = vmatprep.subr.mxu0 %v789
  %1471 = vmatpush1.msra.mxu0 %v788
  %1472 = vmatprep.subr.mxu0 %v797
  %1473 = vmatpush1.msra.mxu0 %v796
  %1474 = vmatprep.mubr.f32.mxu0 %v31
  %1475 = vmatmul.mubr.f32.gmra.mrb[0].mxu0 %v30
  %v1476 = vpop.f32.mrb[0].mxu0
  %v1477 = vadd.f32 %v1406, %v1476
  %v1478 = vpop.f32.mrb[0].mxu0
  %v1479 = vadd.f32 %v1408, %v1478
  %1480 = vdwg.mxu0
  %1481 = vmatprep.subr.mxu0 %v39
  %1482 = vmatpush1.msra.mxu0 %v38
  %1483 = vmatprep.subr.mxu0 %v47
  %1484 = vmatpush1.msra.mxu0 %v46
  %1485 = vmatprep.subr.mxu0 %v55
  %1486 = vmatpush1.msra.mxu0 %v54
  %1487 = vmatprep.subr.mxu0 %v63
  %1488 = vmatpush1.msra.mxu0 %v62
  %1489 = vmatprep.subr.mxu0 %v71
  %1490 = vmatpush1.msra.mxu0 %v70
  %1491 = vmatprep.subr.mxu0 %v79
  %1492 = vmatpush1.msra.mxu0 %v78
  %1493 = vmatprep.subr.mxu0 %v87
  %1494 = vmatpush1.msra.mxu0 %v86
  %1495 = vmatprep.subr.mxu0 %v95
  %1496 = vmatpush1.msra.mxu0 %v94
  %1497 = vmatprep.subr.mxu0 %v103
  %1498 = vmatpush1.msra.mxu0 %v102
  %1499 = vmatprep.subr.mxu0 %v111
  %1500 = vmatpush1.msra.mxu0 %v110
  %1501 = vmatprep.subr.mxu0 %v119
  %1502 = vmatpush1.msra.mxu0 %v118
  %1503 = vmatprep.subr.mxu0 %v127
  %1504 = vmatpush1.msra.mxu0 %v126
  %1505 = vmatprep.subr.mxu0 %v135
  %1506 = vmatpush1.msra.mxu0 %v134
  %1507 = vmatprep.subr.mxu0 %v143
  %1508 = vmatpush1.msra.mxu0 %v142
  %1509 = vmatprep.subr.mxu0 %v151
  %1510 = vmatpush1.msra.mxu0 %v150
  %1511 = vmatprep.subr.mxu0 %v159
  %1512 = vmatpush1.msra.mxu0 %v158
  %1513 = vmatprep.subr.mxu0 %v167
  %1514 = vmatpush1.msra.mxu0 %v166
  %1515 = vmatprep.subr.mxu0 %v175
  %1516 = vmatpush1.msra.mxu0 %v174
  %1517 = vmatprep.subr.mxu0 %v183
  %1518 = vmatpush1.msra.mxu0 %v182
  %1519 = vmatprep.subr.mxu0 %v191
  %1520 = vmatpush1.msra.mxu0 %v190
  %1521 = vmatprep.subr.mxu0 %v199
  %1522 = vmatpush1.msra.mxu0 %v198
  %1523 = vmatprep.subr.mxu0 %v207
  %1524 = vmatpush1.msra.mxu0 %v206
  %1525 = vmatprep.subr.mxu0 %v215
  %1526 = vmatpush1.msra.mxu0 %v214
  %1527 = vmatprep.subr.mxu0 %v223
  %1528 = vmatpush1.msra.mxu0 %v222
  %1529 = vmatprep.subr.mxu0 %v231
  %1530 = vmatpush1.msra.mxu0 %v230
  %1531 = vmatprep.subr.mxu0 %v239
  %1532 = vmatpush1.msra.mxu0 %v238
  %1533 = vmatprep.subr.mxu0 %v247
  %1534 = vmatpush1.msra.mxu0 %v246
  %1535 = vmatprep.subr.mxu0 %v255
  %1536 = vmatpush1.msra.mxu0 %v254
  %1537 = vmatprep.subr.mxu0 %v263
  %1538 = vmatpush1.msra.mxu0 %v262
  %1539 = vmatprep.subr.mxu0 %v271
  %1540 = vmatpush1.msra.mxu0 %v270
  %1541 = vmatprep.subr.mxu0 %v279
  %1542 = vmatpush1.msra.mxu0 %v278
  %1543 = vmatprep.subr.mxu0 %v287
  %1544 = vmatpush1.msra.mxu0 %v286
  %1545 = vmatprep.mubr.f32.mxu0 %v27
  %1546 = vmatmul.mubr.f32.gmra.mrb[0].mxu0 %v26
  %v1547 = vpop.f32.mrb[0].mxu0
  %v1548 = vadd.f32 %v829, %v1547
  %v1549 = vpop.f32.mrb[0].mxu0
  %v1550 = vadd.f32 %v833, %v1549
  %1551 = vdwg.mxu0
  %1552 = vmatprep.subr.mxu0 %v295
  %1553 = vmatpush1.msra.mxu0 %v294
  %1554 = vmatprep.subr.mxu0 %v303
  %1555 = vmatpush1.msra.mxu0 %v302
  %1556 = vmatprep.subr.mxu0 %v311
  %1557 = vmatpush1.msra.mxu0 %v310
  %1558 = vmatprep.subr.mxu0 %v319
  %1559 = vmatpush1.msra.mxu0 %v318
  %1560 = vmatprep.subr.mxu0 %v327
  %1561 = vmatpush1.msra.mxu0 %v326
  %1562 = vmatprep.subr.mxu0 %v335
  %1563 = vmatpush1.msra.mxu0 %v334
  %1564 = vmatprep.subr.mxu0 %v343
  %1565 = vmatpush1.msra.mxu0 %v342
  %1566 = vmatprep.subr.mxu0 %v351
  %1567 = vmatpush1.msra.mxu0 %v350
  %1568 = vmatprep.subr.mxu0 %v359
  %1569 = vmatpush1.msra.mxu0 %v358
  %1570 = vmatprep.subr.mxu0 %v367
  %1571 = vmatpush1.msra.mxu0 %v366
  %1572 = vmatprep.subr.mxu0 %v375
  %1573 = vmatpush1.msra.mxu0 %v374
  %1574 = vmatprep.subr.mxu0 %v383
  %1575 = vmatpush1.msra.mxu0 %v382
  %1576 = vmatprep.subr.mxu0 %v391
  %1577 = vmatpush1.msra.mxu0 %v390
  %1578 = vmatprep.subr.mxu0 %v399
  %1579 = vmatpush1.msra.mxu0 %v398
  %1580 = vmatprep.subr.mxu0 %v407
  %1581 = vmatpush1.msra.mxu0 %v406
  %1582 = vmatprep.subr.mxu0 %v415
  %1583 = vmatpush1.msra.mxu0 %v414
  %1584 = vmatprep.subr.mxu0 %v423
  %1585 = vmatpush1.msra.mxu0 %v422
  %1586 = vmatprep.subr.mxu0 %v431
  %1587 = vmatpush1.msra.mxu0 %v430
  %1588 = vmatprep.subr.mxu0 %v439
  %1589 = vmatpush1.msra.mxu0 %v438
  %1590 = vmatprep.subr.mxu0 %v447
  %1591 = vmatpush1.msra.mxu0 %v446
  %1592 = vmatprep.subr.mxu0 %v455
  %1593 = vmatpush1.msra.mxu0 %v454
  %1594 = vmatprep.subr.mxu0 %v463
  %1595 = vmatpush1.msra.mxu0 %v462
  %1596 = vmatprep.subr.mxu0 %v471
  %1597 = vmatpush1.msra.mxu0 %v470
  %1598 = vmatprep.subr.mxu0 %v479
  %1599 = vmatpush1.msra.mxu0 %v478
  %1600 = vmatprep.subr.mxu0 %v487
  %1601 = vmatpush1.msra.mxu0 %v486
  %1602 = vmatprep.subr.mxu0 %v495
  %1603 = vmatpush1.msra.mxu0 %v494
  %1604 = vmatprep.subr.mxu0 %v503
  %1605 = vmatpush1.msra.mxu0 %v502
  %1606 = vmatprep.subr.mxu0 %v511
  %1607 = vmatpush1.msra.mxu0 %v510
  %1608 = vmatprep.subr.mxu0 %v519
  %1609 = vmatpush1.msra.mxu0 %v518
  %1610 = vmatprep.subr.mxu0 %v527
  %1611 = vmatpush1.msra.mxu0 %v526
  %1612 = vmatprep.subr.mxu0 %v535
  %1613 = vmatpush1.msra.mxu0 %v534
  %1614 = vmatprep.subr.mxu0 %v543
  %1615 = vmatpush1.msra.mxu0 %v542
  %1616 = vmatprep.mubr.f32.mxu0 %v29
  %1617 = vmatmul.mubr.f32.gmra.mrb[0].mxu0 %v28
  %v1618 = vpop.f32.mrb[0].mxu0
  %v1619 = vadd.f32 %v1548, %v1618
  %v1620 = vpop.f32.mrb[0].mxu0
  %v1621 = vadd.f32 %v1550, %v1620
  %1622 = vdwg.mxu0
  %1623 = vmatprep.subr.mxu0 %v551
  %1624 = vmatpush1.msra.mxu0 %v550
  %1625 = vmatprep.subr.mxu0 %v559
  %1626 = vmatpush1.msra.mxu0 %v558
  %1627 = vmatprep.subr.mxu0 %v567
  %1628 = vmatpush1.msra.mxu0 %v566
  %1629 = vmatprep.subr.mxu0 %v575
  %1630 = vmatpush1.msra.mxu0 %v574
  %1631 = vmatprep.subr.mxu0 %v583
  %1632 = vmatpush1.msra.mxu0 %v582
  %1633 = vmatprep.subr.mxu0 %v591
  %1634 = vmatpush1.msra.mxu0 %v590
  %1635 = vmatprep.subr.mxu0 %v599
  %1636 = vmatpush1.msra.mxu0 %v598
  %1637 = vmatprep.subr.mxu0 %v607
  %1638 = vmatpush1.msra.mxu0 %v606
  %1639 = vmatprep.subr.mxu0 %v615
  %1640 = vmatpush1.msra.mxu0 %v614
  %1641 = vmatprep.subr.mxu0 %v623
  %1642 = vmatpush1.msra.mxu0 %v622
  %1643 = vmatprep.subr.mxu0 %v631
  %1644 = vmatpush1.msra.mxu0 %v630
  %1645 = vmatprep.subr.mxu0 %v639
  %1646 = vmatpush1.msra.mxu0 %v638
  %1647 = vmatprep.subr.mxu0 %v647
  %1648 = vmatpush1.msra.mxu0 %v646
  %1649 = vmatprep.subr.mxu0 %v655
  %1650 = vmatpush1.msra.mxu0 %v654
  %1651 = vmatprep.subr.mxu0 %v663
  %1652 = vmatpush1.msra.mxu0 %v662
  %1653 = vmatprep.subr.mxu0 %v671
  %1654 = vmatpush1.msra.mxu0 %v670
  %1655 = vmatprep.subr.mxu0 %v679
  %1656 = vmatpush1.msra.mxu0 %v678
  %1657 = vmatprep.subr.mxu0 %v687
  %1658 = vmatpush1.msra.mxu0 %v686
  %1659 = vmatprep.subr.mxu0 %v695
  %1660 = vmatpush1.msra.mxu0 %v694
  %1661 = vmatprep.subr.mxu0 %v703
  %1662 = vmatpush1.msra.mxu0 %v702
  %1663 = vmatprep.subr.mxu0 %v711
  %1664 = vmatpush1.msra.mxu0 %v710
  %1665 = vmatprep.subr.mxu0 %v719
  %1666 = vmatpush1.msra.mxu0 %v718
  %1667 = vmatprep.subr.mxu0 %v727
  %1668 = vmatpush1.msra.mxu0 %v726
  %1669 = vmatprep.subr.mxu0 %v735
  %1670 = vmatpush1.msra.mxu0 %v734
  %1671 = vmatprep.subr.mxu0 %v743
  %1672 = vmatpush1.msra.mxu0 %v742
  %1673 = vmatprep.subr.mxu0 %v751
  %1674 = vmatpush1.msra.mxu0 %v750
  %1675 = vmatprep.subr.mxu0 %v759
  %1676 = vmatpush1.msra.mxu0 %v758
  %1677 = vmatprep.subr.mxu0 %v767
  %1678 = vmatpush1.msra.mxu0 %v766
  %1679 = vmatprep.subr.mxu0 %v775
  %1680 = vmatpush1.msra.mxu0 %v774
  %1681 = vmatprep.subr.mxu0 %v783
  %1682 = vmatpush1.msra.mxu0 %v782
  %1683 = vmatprep.subr.mxu0 %v791
  %1684 = vmatpush1.msra.mxu0 %v790
  %1685 = vmatprep.subr.mxu0 %v799
  %1686 = vmatpush1.msra.mxu0 %v798
  %1687 = vmatprep.mubr.f32.mxu0 %v31
  %1688 = vmatmul.mubr.f32.gmra.mrb[0].mxu0 %v30
  %v1689 = vpop.f32.mrb[0].mxu0
  %v1690 = vadd.f32 %v1619, %v1689
  %v1691 = vpop.f32.mrb[0].mxu0
  %v1692 = vadd.f32 %v1621, %v1691
  %1693 = vdwg.mxu0
  %v1694 = vmul.f32 %v1051, 0.5
  %v1695 = vmul.f32 %v1053, 0.5
  %v1696 = vmul.f32 %v1264, 0.5
  %v1697 = vmul.f32 %v1266, 0.5
  %v1698 = vmul.f32 %v1477, 0.5
  %v1699 = vmul.f32 %v1479, 0.5
  %v1700 = vmul.f32 %v1690, 0.5
  %v1701 = vmul.f32 %v1692, 0.5
  %v1702 = vmul.f32 %v1051, 0.70710677
  %v1703 = vmul.f32 %v1053, 0.70710677
  %v1704 = vmul.f32 %v1264, 0.70710677
  %v1705 = vmul.f32 %v1266, 0.70710677
  %v1706 = vmul.f32 %v1477, 0.70710677
  %v1707 = vmul.f32 %v1479, 0.70710677
  %v1708 = vmul.f32 %v1690, 0.70710677
  %v1709 = vmul.f32 %v1692, 0.70710677
  %v1710 = verf.f32.pop %v1702
  %v1711 = verf.f32.pop %v1703
  %v1712 = verf.f32.pop %v1704
  %v1713 = verf.f32.pop %v1705
  %v1714 = verf.f32.pop %v1706
  %v1715 = verf.f32.pop %v1707
  %v1716 = verf.f32.pop %v1708
  %v1717 = verf.f32.pop %v1709
  %v1718 = vadd.f32 %v1710, 1.0
  %v1719 = vadd.f32 %v1711, 1.0
  %v1720 = vadd.f32 %v1712, 1.0
  %v1721 = vadd.f32 %v1713, 1.0
  %v1722 = vadd.f32 %v1714, 1.0
  %v1723 = vadd.f32 %v1715, 1.0
  %v1724 = vadd.f32 %v1716, 1.0
  %v1725 = vadd.f32 %v1717, 1.0
  %v1726 = vmul.f32 %v1694, %v1718
  %v1727 = vmul.f32 %v1695, %v1719
  %v1728 = vmul.f32 %v1696, %v1720
  %v1729 = vmul.f32 %v1697, %v1721
  %v1730 = vmul.f32 %v1698, %v1722
  %v1731 = vmul.f32 %v1699, %v1723
  %v1732 = vmul.f32 %v1700, %v1724
  %v1733 = vmul.f32 %v1701, %v1725
  %v1734 = vld [vmem:[%s3] sm:$0xf]
  %v1735 = vld [vmem:[%s4] sm:$0xf]
  %v1736 = vadd.f32 %v1726, %v1727
  %v1737 = vadd.f32 %v1736, %v1728
  %v1738 = vadd.f32 %v1737, %v1729
  %1739 = vadd.xlane.f32.xlu0 %v1738
  %v1740 = vpop.xlane.xlu0 %1739
  %v1741 = vrcp.pop 512.0
  %v1742 = vmul.f32 %v1740, %v1741
  %v1743 = vsub.f32 %v1726, %v1742
  %v1744 = vsub.f32 %v1727, %v1742
  %v1745 = vsub.f32 %v1728, %v1742
  %v1746 = vsub.f32 %v1729, %v1742
  %v1747 = vmul.f32 %v1743, %v1743
  %v1748 = vmul.f32 %v1744, %v1744
  %v1749 = vmul.f32 %v1745, %v1745
  %v1750 = vmul.f32 %v1746, %v1746
  %v1751 = vadd.f32 %v1747, %v1748
  %v1752 = vadd.f32 %v1751, %v1749
  %v1753 = vadd.f32 %v1752, %v1750
  %1754 = vadd.xlane.f32.xlu0 %v1753
  %v1755 = vpop.xlane.xlu0 %1754
  %v1756 = vmul.f32 %v1755, %v1741
  %v1757 = vadd.f32 %v1756, 1e-05
  %v1758 = vrsqrt.pop %v1757
  %v1759 = vmul.f32 %v1743, %v1758
  %v1760 = vmul.f32 %v1744, %v1758
  %v1761 = vmul.f32 %v1745, %v1758
  %v1762 = vmul.f32 %v1746, %v1758
  %v1764 = vlaneseq
  %v1765 = vshrl.u32 %v1764, 7
  %v1766 = vsub.s32 0, %v1765
  %v1767 = vrot.slane %v1734, %v1766
  %v1768 = vlaneseq
  %v1769 = vshrl.u32 %v1768, 7
  %v1770 = vsub.s32 1, %v1769
  %v1771 = vrot.slane %v1734, %v1770
  %v1772 = vlaneseq
  %v1773 = vshrl.u32 %v1772, 7
  %v1774 = vsub.s32 2, %v1773
  %v1775 = vrot.slane %v1734, %v1774
  %v1776 = vlaneseq
  %v1777 = vshrl.u32 %v1776, 7
  %v1778 = vsub.s32 3, %v1777
  %v1779 = vrot.slane %v1734, %v1778
  %v1784 = vmul.f32 %v1759, %v1767
  %v1785 = vmul.f32 %v1760, %v1771
  %v1786 = vmul.f32 %v1761, %v1775
  %v1787 = vmul.f32 %v1762, %v1779
  %v1789 = vlaneseq
  %v1790 = vshrl.u32 %v1789, 7
  %v1791 = vsub.s32 0, %v1790
  %v1792 = vrot.slane %v1735, %v1791
  %v1793 = vlaneseq
  %v1794 = vshrl.u32 %v1793, 7
  %v1795 = vsub.s32 1, %v1794
  %v1796 = vrot.slane %v1735, %v1795
  %v1797 = vlaneseq
  %v1798 = vshrl.u32 %v1797, 7
  %v1799 = vsub.s32 2, %v1798
  %v1800 = vrot.slane %v1735, %v1799
  %v1801 = vlaneseq
  %v1802 = vshrl.u32 %v1801, 7
  %v1803 = vsub.s32 3, %v1802
  %v1804 = vrot.slane %v1735, %v1803
  %v1809 = vadd.f32 %v1784, %v1792
  %v1810 = vadd.f32 %v1785, %v1796
  %v1811 = vadd.f32 %v1786, %v1800
  %v1812 = vadd.f32 %v1787, %v1804
  %v1813 = vld [vmem:[%s3 + $0x4] sm:$0xf]
  %v1814 = vld [vmem:[%s4 + $0x4] sm:$0xf]
  %v1815 = vadd.f32 %v1730, %v1731
  %v1816 = vadd.f32 %v1815, %v1732
  %v1817 = vadd.f32 %v1816, %v1733
  %1818 = vadd.xlane.f32.xlu0 %v1817
  %v1819 = vpop.xlane.xlu0 %1818
  %v1820 = vmul.f32 %v1819, %v1741
  %v1821 = vsub.f32 %v1730, %v1820
  %v1822 = vsub.f32 %v1731, %v1820
  %v1823 = vsub.f32 %v1732, %v1820
  %v1824 = vsub.f32 %v1733, %v1820
  %v1825 = vmul.f32 %v1821, %v1821
  %v1826 = vmul.f32 %v1822, %v1822
  %v1827 = vmul.f32 %v1823, %v1823
  %v1828 = vmul.f32 %v1824, %v1824
  %v1829 = vadd.f32 %v1825, %v1826
  %v1830 = vadd.f32 %v1829, %v1827
  %v1831 = vadd.f32 %v1830, %v1828
  %1832 = vadd.xlane.f32.xlu0 %v1831
  %v1833 = vpop.xlane.xlu0 %1832
  %v1834 = vmul.f32 %v1833, %v1741
  %v1835 = vadd.f32 %v1834, 1e-05
  %v1836 = vrsqrt.pop %v1835
  %v1837 = vmul.f32 %v1821, %v1836
  %v1838 = vmul.f32 %v1822, %v1836
  %v1839 = vmul.f32 %v1823, %v1836
  %v1840 = vmul.f32 %v1824, %v1836
  %v1842 = vlaneseq
  %v1843 = vshrl.u32 %v1842, 7
  %v1844 = vsub.s32 0, %v1843
  %v1845 = vrot.slane %v1813, %v1844
  %v1846 = vlaneseq
  %v1847 = vshrl.u32 %v1846, 7
  %v1848 = vsub.s32 1, %v1847
  %v1849 = vrot.slane %v1813, %v1848
  %v1850 = vlaneseq
  %v1851 = vshrl.u32 %v1850, 7
  %v1852 = vsub.s32 2, %v1851
  %v1853 = vrot.slane %v1813, %v1852
  %v1854 = vlaneseq
  %v1855 = vshrl.u32 %v1854, 7
  %v1856 = vsub.s32 3, %v1855
  %v1857 = vrot.slane %v1813, %v1856
  %v1862 = vmul.f32 %v1837, %v1845
  %v1863 = vmul.f32 %v1838, %v1849
  %v1864 = vmul.f32 %v1839, %v1853
  %v1865 = vmul.f32 %v1840, %v1857
  %v1867 = vlaneseq
  %v1868 = vshrl.u32 %v1867, 7
  %v1869 = vsub.s32 0, %v1868
  %v1870 = vrot.slane %v1814, %v1869
  %v1871 = vlaneseq
  %v1872 = vshrl.u32 %v1871, 7
  %v1873 = vsub.s32 1, %v1872
  %v1874 = vrot.slane %v1814, %v1873
  %v1875 = vlaneseq
  %v1876 = vshrl.u32 %v1875, 7
  %v1877 = vsub.s32 2, %v1876
  %v1878 = vrot.slane %v1814, %v1877
  %v1879 = vlaneseq
  %v1880 = vshrl.u32 %v1879, 7
  %v1881 = vsub.s32 3, %v1880
  %v1882 = vrot.slane %v1814, %v1881
  %v1887 = vadd.f32 %v1862, %v1870
  %v1888 = vadd.f32 %v1863, %v1874
  %v1889 = vadd.f32 %v1864, %v1878
  %v1890 = vadd.f32 %v1865, %v1882
  %v1891 = vld [vmem:[%s5] sm:$0xff]
  %v1892 = vld [vmem:[%s5 + $0x8] sm:$0xff]
  %v1893 = vld [vmem:[%s5 + $0x10] sm:$0xff]
  %v1894 = vld [vmem:[%s5 + $0x18] sm:$0xff]
  %v1895 = vld [vmem:[%s5 + $0x20] sm:$0xff]
  %v1896 = vld [vmem:[%s5 + $0x28] sm:$0xff]
  %v1897 = vld [vmem:[%s5 + $0x30] sm:$0xff]
  %v1898 = vld [vmem:[%s5 + $0x38] sm:$0xff]
  %v1899 = vld [vmem:[%s5 + $0x40] sm:$0xff]
  %v1900 = vld [vmem:[%s5 + $0x48] sm:$0xff]
  %v1901 = vld [vmem:[%s5 + $0x50] sm:$0xff]
  %v1902 = vld [vmem:[%s5 + $0x58] sm:$0xff]
  %v1903 = vld [vmem:[%s5 + $0x60] sm:$0xff]
  %v1904 = vld [vmem:[%s5 + $0x68] sm:$0xff]
  %v1905 = vld [vmem:[%s5 + $0x70] sm:$0xff]
  %v1906 = vld [vmem:[%s5 + $0x78] sm:$0xff]
  %v1907 = vld [vmem:[%s5 + $0x80] sm:$0xff]
  %v1908 = vld [vmem:[%s5 + $0x88] sm:$0xff]
  %v1909 = vld [vmem:[%s5 + $0x90] sm:$0xff]
  %v1910 = vld [vmem:[%s5 + $0x98] sm:$0xff]
  %v1911 = vld [vmem:[%s5 + $0xa0] sm:$0xff]
  %v1912 = vld [vmem:[%s5 + $0xa8] sm:$0xff]
  %v1913 = vld [vmem:[%s5 + $0xb0] sm:$0xff]
  %v1914 = vld [vmem:[%s5 + $0xb8] sm:$0xff]
  %v1915 = vld [vmem:[%s5 + $0xc0] sm:$0xff]
  %v1916 = vld [vmem:[%s5 + $0xc8] sm:$0xff]
  %v1917 = vld [vmem:[%s5 + $0xd0] sm:$0xff]
  %v1918 = vld [vmem:[%s5 + $0xd8] sm:$0xff]
  %v1919 = vld [vmem:[%s5 + $0xe0] sm:$0xff]
  %v1920 = vld [vmem:[%s5 + $0xe8] sm:$0xff]
  %v1921 = vld [vmem:[%s5 + $0xf0] sm:$0xff]
  %v1922 = vld [vmem:[%s5 + $0xf8] sm:$0xff]
  %v1923 = vld [vmem:[%s5 + $0x100] sm:$0xff]
  %v1924 = vld [vmem:[%s5 + $0x108] sm:$0xff]
  %v1925 = vld [vmem:[%s5 + $0x110] sm:$0xff]
  %v1926 = vld [vmem:[%s5 + $0x118] sm:$0xff]
  %v1927 = vld [vmem:[%s5 + $0x120] sm:$0xff]
  %v1928 = vld [vmem:[%s5 + $0x128] sm:$0xff]
  %v1929 = vld [vmem:[%s5 + $0x130] sm:$0xff]
  %v1930 = vld [vmem:[%s5 + $0x138] sm:$0xff]
  %v1931 = vld [vmem:[%s5 + $0x140] sm:$0xff]
  %v1932 = vld [vmem:[%s5 + $0x148] sm:$0xff]
  %v1933 = vld [vmem:[%s5 + $0x150] sm:$0xff]
  %v1934 = vld [vmem:[%s5 + $0x158] sm:$0xff]
  %v1935 = vld [vmem:[%s5 + $0x160] sm:$0xff]
  %v1936 = vld [vmem:[%s5 + $0x168] sm:$0xff]
  %v1937 = vld [vmem:[%s5 + $0x170] sm:$0xff]
  %v1938 = vld [vmem:[%s5 + $0x178] sm:$0xff]
  %v1939 = vld [vmem:[%s5 + $0x180] sm:$0xff]
  %v1940 = vld [vmem:[%s5 + $0x188] sm:$0xff]
  %v1941 = vld [vmem:[%s5 + $0x190] sm:$0xff]
  %v1942 = vld [vmem:[%s5 + $0x198] sm:$0xff]
  %v1943 = vld [vmem:[%s5 + $0x1a0] sm:$0xff]
  %v1944 = vld [vmem:[%s5 + $0x1a8] sm:$0xff]
  %v1945 = vld [vmem:[%s5 + $0x1b0] sm:$0xff]
  %v1946 = vld [vmem:[%s5 + $0x1b8] sm:$0xff]
  %v1947 = vld [vmem:[%s5 + $0x1c0] sm:$0xff]
  %v1948 = vld [vmem:[%s5 + $0x1c8] sm:$0xff]
  %v1949 = vld [vmem:[%s5 + $0x1d0] sm:$0xff]
  %v1950 = vld [vmem:[%s5 + $0x1d8] sm:$0xff]
  %v1951 = vld [vmem:[%s5 + $0x1e0] sm:$0xff]
  %v1952 = vld [vmem:[%s5 + $0x1e8] sm:$0xff]
  %v1953 = vld [vmem:[%s5 + $0x1f0] sm:$0xff]
  %v1954 = vld [vmem:[%s5 + $0x1f8] sm:$0xff]
  %v1955 = vld [vmem:[%s5 + $0x200] sm:$0xff]
  %v1956 = vld [vmem:[%s5 + $0x208] sm:$0xff]
  %v1957 = vld [vmem:[%s5 + $0x210] sm:$0xff]
  %v1958 = vld [vmem:[%s5 + $0x218] sm:$0xff]
  %v1959 = vld [vmem:[%s5 + $0x220] sm:$0xff]
  %v1960 = vld [vmem:[%s5 + $0x228] sm:$0xff]
  %v1961 = vld [vmem:[%s5 + $0x230] sm:$0xff]
  %v1962 = vld [vmem:[%s5 + $0x238] sm:$0xff]
  %v1963 = vld [vmem:[%s5 + $0x240] sm:$0xff]
  %v1964 = vld [vmem:[%s5 + $0x248] sm:$0xff]
  %v1965 = vld [vmem:[%s5 + $0x250] sm:$0xff]
  %v1966 = vld [vmem:[%s5 + $0x258] sm:$0xff]
  %v1967 = vld [vmem:[%s5 + $0x260] sm:$0xff]
  %v1968 = vld [vmem:[%s5 + $0x268] sm:$0xff]
  %v1969 = vld [vmem:[%s5 + $0x270] sm:$0xff]
  %v1970 = vld [vmem:[%s5 + $0x278] sm:$0xff]
  %v1971 = vld [vmem:[%s5 + $0x280] sm:$0xff]
  %v1972 = vld [vmem:[%s5 + $0x288] sm:$0xff]
  %v1973 = vld [vmem:[%s5 + $0x290] sm:$0xff]
  %v1974 = vld [vmem:[%s5 + $0x298] sm:$0xff]
  %v1975 = vld [vmem:[%s5 + $0x2a0] sm:$0xff]
  %v1976 = vld [vmem:[%s5 + $0x2a8] sm:$0xff]
  %v1977 = vld [vmem:[%s5 + $0x2b0] sm:$0xff]
  %v1978 = vld [vmem:[%s5 + $0x2b8] sm:$0xff]
  %v1979 = vld [vmem:[%s5 + $0x2c0] sm:$0xff]
  %v1980 = vld [vmem:[%s5 + $0x2c8] sm:$0xff]
  %v1981 = vld [vmem:[%s5 + $0x2d0] sm:$0xff]
  %v1982 = vld [vmem:[%s5 + $0x2d8] sm:$0xff]
  %v1983 = vld [vmem:[%s5 + $0x2e0] sm:$0xff]
  %v1984 = vld [vmem:[%s5 + $0x2e8] sm:$0xff]
  %v1985 = vld [vmem:[%s5 + $0x2f0] sm:$0xff]
  %v1986 = vld [vmem:[%s5 + $0x2f8] sm:$0xff]
  %v1987 = vld [vmem:[%s5 + $0x300] sm:$0xff]
  %v1988 = vld [vmem:[%s5 + $0x308] sm:$0xff]
  %v1989 = vld [vmem:[%s5 + $0x310] sm:$0xff]
  %v1990 = vld [vmem:[%s5 + $0x318] sm:$0xff]
  %v1991 = vld [vmem:[%s5 + $0x320] sm:$0xff]
  %v1992 = vld [vmem:[%s5 + $0x328] sm:$0xff]
  %v1993 = vld [vmem:[%s5 + $0x330] sm:$0xff]
  %v1994 = vld [vmem:[%s5 + $0x338] sm:$0xff]
  %v1995 = vld [vmem:[%s5 + $0x340] sm:$0xff]
  %v1996 = vld [vmem:[%s5 + $0x348] sm:$0xff]
  %v1997 = vld [vmem:[%s5 + $0x350] sm:$0xff]
  %v1998 = vld [vmem:[%s5 + $0x358] sm:$0xff]
  %v1999 = vld [vmem:[%s5 + $0x360] sm:$0xff]
  %v2000 = vld [vmem:[%s5 + $0x368] sm:$0xff]
  %v2001 = vld [vmem:[%s5 + $0x370] sm:$0xff]
  %v2002 = vld [vmem:[%s5 + $0x378] sm:$0xff]
  %v2003 = vld [vmem:[%s5 + $0x380] sm:$0xff]
  %v2004 = vld [vmem:[%s5 + $0x388] sm:$0xff]
  %v2005 = vld [vmem:[%s5 + $0x390] sm:$0xff]
  %v2006 = vld [vmem:[%s5 + $0x398] sm:$0xff]
  %v2007 = vld [vmem:[%s5 + $0x3a0] sm:$0xff]
  %v2008 = vld [vmem:[%s5 + $0x3a8] sm:$0xff]
  %v2009 = vld [vmem:[%s5 + $0x3b0] sm:$0xff]
  %v2010 = vld [vmem:[%s5 + $0x3b8] sm:$0xff]
  %v2011 = vld [vmem:[%s5 + $0x3c0] sm:$0xff]
  %v2012 = vld [vmem:[%s5 + $0x3c8] sm:$0xff]
  %v2013 = vld [vmem:[%s5 + $0x3d0] sm:$0xff]
  %v2014 = vld [vmem:[%s5 + $0x3d8] sm:$0xff]
  %v2015 = vld [vmem:[%s5 + $0x3e0] sm:$0xff]
  %v2016 = vld [vmem:[%s5 + $0x3e8] sm:$0xff]
  %v2017 = vld [vmem:[%s5 + $0x3f0] sm:$0xff]
  %v2018 = vld [vmem:[%s5 + $0x3f8] sm:$0xff]
  %v2019 = vld [vmem:[%s5 + $0x400] sm:$0xff]
  %v2020 = vld [vmem:[%s5 + $0x408] sm:$0xff]
  %v2021 = vld [vmem:[%s5 + $0x410] sm:$0xff]
  %v2022 = vld [vmem:[%s5 + $0x418] sm:$0xff]
  %v2023 = vld [vmem:[%s5 + $0x420] sm:$0xff]
  %v2024 = vld [vmem:[%s5 + $0x428] sm:$0xff]
  %v2025 = vld [vmem:[%s5 + $0x430] sm:$0xff]
  %v2026 = vld [vmem:[%s5 + $0x438] sm:$0xff]
  %v2027 = vld [vmem:[%s5 + $0x440] sm:$0xff]
  %v2028 = vld [vmem:[%s5 + $0x448] sm:$0xff]
  %v2029 = vld [vmem:[%s5 + $0x450] sm:$0xff]
  %v2030 = vld [vmem:[%s5 + $0x458] sm:$0xff]
  %v2031 = vld [vmem:[%s5 + $0x460] sm:$0xff]
  %v2032 = vld [vmem:[%s5 + $0x468] sm:$0xff]
  %v2033 = vld [vmem:[%s5 + $0x470] sm:$0xff]
  %v2034 = vld [vmem:[%s5 + $0x478] sm:$0xff]
  %v2035 = vld [vmem:[%s5 + $0x480] sm:$0xff]
  %v2036 = vld [vmem:[%s5 + $0x488] sm:$0xff]
  %v2037 = vld [vmem:[%s5 + $0x490] sm:$0xff]
  %v2038 = vld [vmem:[%s5 + $0x498] sm:$0xff]
  %v2039 = vld [vmem:[%s5 + $0x4a0] sm:$0xff]
  %v2040 = vld [vmem:[%s5 + $0x4a8] sm:$0xff]
  %v2041 = vld [vmem:[%s5 + $0x4b0] sm:$0xff]
  %v2042 = vld [vmem:[%s5 + $0x4b8] sm:$0xff]
  %v2043 = vld [vmem:[%s5 + $0x4c0] sm:$0xff]
  %v2044 = vld [vmem:[%s5 + $0x4c8] sm:$0xff]
  %v2045 = vld [vmem:[%s5 + $0x4d0] sm:$0xff]
  %v2046 = vld [vmem:[%s5 + $0x4d8] sm:$0xff]
  %v2047 = vld [vmem:[%s5 + $0x4e0] sm:$0xff]
  %v2048 = vld [vmem:[%s5 + $0x4e8] sm:$0xff]
  %v2049 = vld [vmem:[%s5 + $0x4f0] sm:$0xff]
  %v2050 = vld [vmem:[%s5 + $0x4f8] sm:$0xff]
  %v2051 = vld [vmem:[%s5 + $0x500] sm:$0xff]
  %v2052 = vld [vmem:[%s5 + $0x508] sm:$0xff]
  %v2053 = vld [vmem:[%s5 + $0x510] sm:$0xff]
  %v2054 = vld [vmem:[%s5 + $0x518] sm:$0xff]
  %v2055 = vld [vmem:[%s5 + $0x520] sm:$0xff]
  %v2056 = vld [vmem:[%s5 + $0x528] sm:$0xff]
  %v2057 = vld [vmem:[%s5 + $0x530] sm:$0xff]
  %v2058 = vld [vmem:[%s5 + $0x538] sm:$0xff]
  %v2059 = vld [vmem:[%s5 + $0x540] sm:$0xff]
  %v2060 = vld [vmem:[%s5 + $0x548] sm:$0xff]
  %v2061 = vld [vmem:[%s5 + $0x550] sm:$0xff]
  %v2062 = vld [vmem:[%s5 + $0x558] sm:$0xff]
  %v2063 = vld [vmem:[%s5 + $0x560] sm:$0xff]
  %v2064 = vld [vmem:[%s5 + $0x568] sm:$0xff]
  %v2065 = vld [vmem:[%s5 + $0x570] sm:$0xff]
  %v2066 = vld [vmem:[%s5 + $0x578] sm:$0xff]
  %v2067 = vld [vmem:[%s5 + $0x580] sm:$0xff]
  %v2068 = vld [vmem:[%s5 + $0x588] sm:$0xff]
  %v2069 = vld [vmem:[%s5 + $0x590] sm:$0xff]
  %v2070 = vld [vmem:[%s5 + $0x598] sm:$0xff]
  %v2071 = vld [vmem:[%s5 + $0x5a0] sm:$0xff]
  %v2072 = vld [vmem:[%s5 + $0x5a8] sm:$0xff]
  %v2073 = vld [vmem:[%s5 + $0x5b0] sm:$0xff]
  %v2074 = vld [vmem:[%s5 + $0x5b8] sm:$0xff]
  %v2075 = vld [vmem:[%s5 + $0x5c0] sm:$0xff]
  %v2076 = vld [vmem:[%s5 + $0x5c8] sm:$0xff]
  %v2077 = vld [vmem:[%s5 + $0x5d0] sm:$0xff]
  %v2078 = vld [vmem:[%s5 + $0x5d8] sm:$0xff]
  %v2079 = vld [vmem:[%s5 + $0x5e0] sm:$0xff]
  %v2080 = vld [vmem:[%s5 + $0x5e8] sm:$0xff]
  %v2081 = vld [vmem:[%s5 + $0x5f0] sm:$0xff]
  %v2082 = vld [vmem:[%s5 + $0x5f8] sm:$0xff]
  %v2083 = vld [vmem:[%s5 + $0x600] sm:$0xff]
  %v2084 = vld [vmem:[%s5 + $0x608] sm:$0xff]
  %v2085 = vld [vmem:[%s5 + $0x610] sm:$0xff]
  %v2086 = vld [vmem:[%s5 + $0x618] sm:$0xff]
  %v2087 = vld [vmem:[%s5 + $0x620] sm:$0xff]
  %v2088 = vld [vmem:[%s5 + $0x628] sm:$0xff]
  %v2089 = vld [vmem:[%s5 + $0x630] sm:$0xff]
  %v2090 = vld [vmem:[%s5 + $0x638] sm:$0xff]
  %v2091 = vld [vmem:[%s5 + $0x640] sm:$0xff]
  %v2092 = vld [vmem:[%s5 + $0x648] sm:$0xff]
  %v2093 = vld [vmem:[%s5 + $0x650] sm:$0xff]
  %v2094 = vld [vmem:[%s5 + $0x658] sm:$0xff]
  %v2095 = vld [vmem:[%s5 + $0x660] sm:$0xff]
  %v2096 = vld [vmem:[%s5 + $0x668] sm:$0xff]
  %v2097 = vld [vmem:[%s5 + $0x670] sm:$0xff]
  %v2098 = vld [vmem:[%s5 + $0x678] sm:$0xff]
  %v2099 = vld [vmem:[%s5 + $0x680] sm:$0xff]
  %v2100 = vld [vmem:[%s5 + $0x688] sm:$0xff]
  %v2101 = vld [vmem:[%s5 + $0x690] sm:$0xff]
  %v2102 = vld [vmem:[%s5 + $0x698] sm:$0xff]
  %v2103 = vld [vmem:[%s5 + $0x6a0] sm:$0xff]
  %v2104 = vld [vmem:[%s5 + $0x6a8] sm:$0xff]
  %v2105 = vld [vmem:[%s5 + $0x6b0] sm:$0xff]
  %v2106 = vld [vmem:[%s5 + $0x6b8] sm:$0xff]
  %v2107 = vld [vmem:[%s5 + $0x6c0] sm:$0xff]
  %v2108 = vld [vmem:[%s5 + $0x6c8] sm:$0xff]
  %v2109 = vld [vmem:[%s5 + $0x6d0] sm:$0xff]
  %v2110 = vld [vmem:[%s5 + $0x6d8] sm:$0xff]
  %v2111 = vld [vmem:[%s5 + $0x6e0] sm:$0xff]
  %v2112 = vld [vmem:[%s5 + $0x6e8] sm:$0xff]
  %v2113 = vld [vmem:[%s5 + $0x6f0] sm:$0xff]
  %v2114 = vld [vmem:[%s5 + $0x6f8] sm:$0xff]
  %v2115 = vld [vmem:[%s5 + $0x700] sm:$0xff]
  %v2116 = vld [vmem:[%s5 + $0x708] sm:$0xff]
  %v2117 = vld [vmem:[%s5 + $0x710] sm:$0xff]
  %v2118 = vld [vmem:[%s5 + $0x718] sm:$0xff]
  %v2119 = vld [vmem:[%s5 + $0x720] sm:$0xff]
  %v2120 = vld [vmem:[%s5 + $0x728] sm:$0xff]
  %v2121 = vld [vmem:[%s5 + $0x730] sm:$0xff]
  %v2122 = vld [vmem:[%s5 + $0x738] sm:$0xff]
  %v2123 = vld [vmem:[%s5 + $0x740] sm:$0xff]
  %v2124 = vld [vmem:[%s5 + $0x748] sm:$0xff]
  %v2125 = vld [vmem:[%s5 + $0x750] sm:$0xff]
  %v2126 = vld [vmem:[%s5 + $0x758] sm:$0xff]
  %v2127 = vld [vmem:[%s5 + $0x760] sm:$0xff]
  %v2128 = vld [vmem:[%s5 + $0x768] sm:$0xff]
  %v2129 = vld [vmem:[%s5 + $0x770] sm:$0xff]
  %v2130 = vld [vmem:[%s5 + $0x778] sm:$0xff]
  %v2131 = vld [vmem:[%s5 + $0x780] sm:$0xff]
  %v2132 = vld [vmem:[%s5 + $0x788] sm:$0xff]
  %v2133 = vld [vmem:[%s5 + $0x790] sm:$0xff]
  %v2134 = vld [vmem:[%s5 + $0x798] sm:$0xff]
  %v2135 = vld [vmem:[%s5 + $0x7a0] sm:$0xff]
  %v2136 = vld [vmem:[%s5 + $0x7a8] sm:$0xff]
  %v2137 = vld [vmem:[%s5 + $0x7b0] sm:$0xff]
  %v2138 = vld [vmem:[%s5 + $0x7b8] sm:$0xff]
  %v2139 = vld [vmem:[%s5 + $0x7c0] sm:$0xff]
  %v2140 = vld [vmem:[%s5 + $0x7c8] sm:$0xff]
  %v2141 = vld [vmem:[%s5 + $0x7d0] sm:$0xff]
  %v2142 = vld [vmem:[%s5 + $0x7d8] sm:$0xff]
  %v2143 = vld [vmem:[%s5 + $0x7e0] sm:$0xff]
  %v2144 = vld [vmem:[%s5 + $0x7e8] sm:$0xff]
  %v2145 = vld [vmem:[%s5 + $0x7f0] sm:$0xff]
  %v2146 = vld [vmem:[%s5 + $0x7f8] sm:$0xff]
  %v2147 = vld [vmem:[%s6] sm:$0x3]
  %v2149 = vlaneseq
  %v2150 = vshrl.u32 %v2149, 7
  %v2151 = vsub.s32 0, %v2150
  %v2152 = vrot.slane %v2147, %v2151
  %v2153 = vlaneseq
  %v2154 = vshrl.u32 %v2153, 7
  %v2155 = vsub.s32 1, %v2154
  %v2156 = vrot.slane %v2147, %v2155
  %2159 = vmatprep.subr.mxu0 %v1892
  %2160 = vmatpush1.msra.mxu0 %v1891
  %2161 = vmatprep.subr.mxu0 %v1894
  %2162 = vmatpush1.msra.mxu0 %v1893
  %2163 = vmatprep.subr.mxu0 %v1896
  %2164 = vmatpush1.msra.mxu0 %v1895
  %2165 = vmatprep.subr.mxu0 %v1898
  %2166 = vmatpush1.msra.mxu0 %v1897
  %2167 = vmatprep.subr.mxu0 %v1900
  %2168 = vmatpush1.msra.mxu0 %v1899
  %2169 = vmatprep.subr.mxu0 %v1902
  %2170 = vmatpush1.msra.mxu0 %v1901
  %2171 = vmatprep.subr.mxu0 %v1904
  %2172 = vmatpush1.msra.mxu0 %v1903
  %2173 = vmatprep.subr.mxu0 %v1906
  %2174 = vmatpush1.msra.mxu0 %v1905
  %2175 = vmatprep.subr.mxu0 %v1908
  %2176 = vmatpush1.msra.mxu0 %v1907
  %2177 = vmatprep.subr.mxu0 %v1910
  %2178 = vmatpush1.msra.mxu0 %v1909
  %2179 = vmatprep.subr.mxu0 %v1912
  %2180 = vmatpush1.msra.mxu0 %v1911
  %2181 = vmatprep.subr.mxu0 %v1914
  %2182 = vmatpush1.msra.mxu0 %v1913
  %2183 = vmatprep.subr.mxu0 %v1916
  %2184 = vmatpush1.msra.mxu0 %v1915
  %2185 = vmatprep.subr.mxu0 %v1918
  %2186 = vmatpush1.msra.mxu0 %v1917
  %2187 = vmatprep.subr.mxu0 %v1920
  %2188 = vmatpush1.msra.mxu0 %v1919
  %2189 = vmatprep.subr.mxu0 %v1922
  %2190 = vmatpush1.msra.mxu0 %v1921
  %2191 = vmatprep.subr.mxu0 %v1924
  %2192 = vmatpush1.msra.mxu0 %v1923
  %2193 = vmatprep.subr.mxu0 %v1926
  %2194 = vmatpush1.msra.mxu0 %v1925
  %2195 = vmatprep.subr.mxu0 %v1928
  %2196 = vmatpush1.msra.mxu0 %v1927
  %2197 = vmatprep.subr.mxu0 %v1930
  %2198 = vmatpush1.msra.mxu0 %v1929
  %2199 = vmatprep.subr.mxu0 %v1932
  %2200 = vmatpush1.msra.mxu0 %v1931
  %2201 = vmatprep.subr.mxu0 %v1934
  %2202 = vmatpush1.msra.mxu0 %v1933
  %2203 = vmatprep.subr.mxu0 %v1936
  %2204 = vmatpush1.msra.mxu0 %v1935
  %2205 = vmatprep.subr.mxu0 %v1938
  %2206 = vmatpush1.msra.mxu0 %v1937
  %2207 = vmatprep.subr.mxu0 %v1940
  %2208 = vmatpush1.msra.mxu0 %v1939
  %2209 = vmatprep.subr.mxu0 %v1942
  %2210 = vmatpush1.msra.mxu0 %v1941
  %2211 = vmatprep.subr.mxu0 %v1944
  %2212 = vmatpush1.msra.mxu0 %v1943
  %2213 = vmatprep.subr.mxu0 %v1946
  %2214 = vmatpush1.msra.mxu0 %v1945
  %2215 = vmatprep.subr.mxu0 %v1948
  %2216 = vmatpush1.msra.mxu0 %v1947
  %2217 = vmatprep.subr.mxu0 %v1950
  %2218 = vmatpush1.msra.mxu0 %v1949
  %2219 = vmatprep.subr.mxu0 %v1952
  %2220 = vmatpush1.msra.mxu0 %v1951
  %2221 = vmatprep.subr.mxu0 %v1954
  %2222 = vmatpush1.msra.mxu0 %v1953
  %2223 = vmatprep.mubr.f32.mxu0 %v1810
  %2224 = vmatmul.mubr.f32.gmra.mrb[0].mxu0 %v1809
  %v2225 = vpop.f32.mrb[0].mxu0
  %v2226 = vadd.f32 %v2152, %v2225
  %v2227 = vpop.f32.mrb[0].mxu0
  %v2228 = vadd.f32 %v2156, %v2227
  %2229 = vdwg.mxu0
  %2230 = vmatprep.subr.mxu0 %v1956
  %2231 = vmatpush1.msra.mxu0 %v1955
  %2232 = vmatprep.subr.mxu0 %v1958
  %2233 = vmatpush1.msra.mxu0 %v1957
  %2234 = vmatprep.subr.mxu0 %v1960
  %2235 = vmatpush1.msra.mxu0 %v1959
  %2236 = vmatprep.subr.mxu0 %v1962
  %2237 = vmatpush1.msra.mxu0 %v1961
  %2238 = vmatprep.subr.mxu0 %v1964
  %2239 = vmatpush1.msra.mxu0 %v1963
  %2240 = vmatprep.subr.mxu0 %v1966
  %2241 = vmatpush1.msra.mxu0 %v1965
  %2242 = vmatprep.subr.mxu0 %v1968
  %2243 = vmatpush1.msra.mxu0 %v1967
  %2244 = vmatprep.subr.mxu0 %v1970
  %2245 = vmatpush1.msra.mxu0 %v1969
  %2246 = vmatprep.subr.mxu0 %v1972
  %2247 = vmatpush1.msra.mxu0 %v1971
  %2248 = vmatprep.subr.mxu0 %v1974
  %2249 = vmatpush1.msra.mxu0 %v1973
  %2250 = vmatprep.subr.mxu0 %v1976
  %2251 = vmatpush1.msra.mxu0 %v1975
  %2252 = vmatprep.subr.mxu0 %v1978
  %2253 = vmatpush1.msra.mxu0 %v1977
  %2254 = vmatprep.subr.mxu0 %v1980
  %2255 = vmatpush1.msra.mxu0 %v1979
  %2256 = vmatprep.subr.mxu0 %v1982
  %2257 = vmatpush1.msra.mxu0 %v1981
  %2258 = vmatprep.subr.mxu0 %v1984
  %2259 = vmatpush1.msra.mxu0 %v1983
  %2260 = vmatprep.subr.mxu0 %v1986
  %2261 = vmatpush1.msra.mxu0 %v1985
  %2262 = vmatprep.subr.mxu0 %v1988
  %2263 = vmatpush1.msra.mxu0 %v1987
  %2264 = vmatprep.subr.mxu0 %v1990
  %2265 = vmatpush1.msra.mxu0 %v1989
  %2266 = vmatprep.subr.mxu0 %v1992
  %2267 = vmatpush1.msra.mxu0 %v1991
  %2268 = vmatprep.subr.mxu0 %v1994
  %2269 = vmatpush1.msra.mxu0 %v1993
  %2270 = vmatprep.subr.mxu0 %v1996
  %2271 = vmatpush1.msra.mxu0 %v1995
  %2272 = vmatprep.subr.mxu0 %v1998
  %2273 = vmatpush1.msra.mxu0 %v1997
  %2274 = vmatprep.subr.mxu0 %v2000
  %2275 = vmatpush1.msra.mxu0 %v1999
  %2276 = vmatprep.subr.mxu0 %v2002
  %2277 = vmatpush1.msra.mxu0 %v2001
  %2278 = vmatprep.subr.mxu0 %v2004
  %2279 = vmatpush1.msra.mxu0 %v2003
  %2280 = vmatprep.subr.mxu0 %v2006
  %2281 = vmatpush1.msra.mxu0 %v2005
  %2282 = vmatprep.subr.mxu0 %v2008
  %2283 = vmatpush1.msra.mxu0 %v2007
  %2284 = vmatprep.subr.mxu0 %v2010
  %2285 = vmatpush1.msra.mxu0 %v2009
  %2286 = vmatprep.subr.mxu0 %v2012
  %2287 = vmatpush1.msra.mxu0 %v2011
  %2288 = vmatprep.subr.mxu0 %v2014
  %2289 = vmatpush1.msra.mxu0 %v2013
  %2290 = vmatprep.subr.mxu0 %v2016
  %2291 = vmatpush1.msra.mxu0 %v2015
  %2292 = vmatprep.subr.mxu0 %v2018
  %2293 = vmatpush1.msra.mxu0 %v2017
  %2294 = vmatprep.mubr.f32.mxu0 %v1812
  %2295 = vmatmul.mubr.f32.gmra.mrb[0].mxu0 %v1811
  %v2296 = vpop.f32.mrb[0].mxu0
  %v2297 = vadd.f32 %v2226, %v2296
  %v2298 = vpop.f32.mrb[0].mxu0
  %v2299 = vadd.f32 %v2228, %v2298
  %2300 = vdwg.mxu0
  %2301 = vmatprep.subr.mxu0 %v2020
  %2302 = vmatpush1.msra.mxu0 %v2019
  %2303 = vmatprep.subr.mxu0 %v2022
  %2304 = vmatpush1.msra.mxu0 %v2021
  %2305 = vmatprep.subr.mxu0 %v2024
  %2306 = vmatpush1.msra.mxu0 %v2023
  %2307 = vmatprep.subr.mxu0 %v2026
  %2308 = vmatpush1.msra.mxu0 %v2025
  %2309 = vmatprep.subr.mxu0 %v2028
  %2310 = vmatpush1.msra.mxu0 %v2027
  %2311 = vmatprep.subr.mxu0 %v2030
  %2312 = vmatpush1.msra.mxu0 %v2029
  %2313 = vmatprep.subr.mxu0 %v2032
  %2314 = vmatpush1.msra.mxu0 %v2031
  %2315 = vmatprep.subr.mxu0 %v2034
  %2316 = vmatpush1.msra.mxu0 %v2033
  %2317 = vmatprep.subr.mxu0 %v2036
  %2318 = vmatpush1.msra.mxu0 %v2035
  %2319 = vmatprep.subr.mxu0 %v2038
  %2320 = vmatpush1.msra.mxu0 %v2037
  %2321 = vmatprep.subr.mxu0 %v2040
  %2322 = vmatpush1.msra.mxu0 %v2039
  %2323 = vmatprep.subr.mxu0 %v2042
  %2324 = vmatpush1.msra.mxu0 %v2041
  %2325 = vmatprep.subr.mxu0 %v2044
  %2326 = vmatpush1.msra.mxu0 %v2043
  %2327 = vmatprep.subr.mxu0 %v2046
  %2328 = vmatpush1.msra.mxu0 %v2045
  %2329 = vmatprep.subr.mxu0 %v2048
  %2330 = vmatpush1.msra.mxu0 %v2047
  %2331 = vmatprep.subr.mxu0 %v2050
  %2332 = vmatpush1.msra.mxu0 %v2049
  %2333 = vmatprep.subr.mxu0 %v2052
  %2334 = vmatpush1.msra.mxu0 %v2051
  %2335 = vmatprep.subr.mxu0 %v2054
  %2336 = vmatpush1.msra.mxu0 %v2053
  %2337 = vmatprep.subr.mxu0 %v2056
  %2338 = vmatpush1.msra.mxu0 %v2055
  %2339 = vmatprep.subr.mxu0 %v2058
  %2340 = vmatpush1.msra.mxu0 %v2057
  %2341 = vmatprep.subr.mxu0 %v2060
  %2342 = vmatpush1.msra.mxu0 %v2059
  %2343 = vmatprep.subr.mxu0 %v2062
  %2344 = vmatpush1.msra.mxu0 %v2061
  %2345 = vmatprep.subr.mxu0 %v2064
  %2346 = vmatpush1.msra.mxu0 %v2063
  %2347 = vmatprep.subr.mxu0 %v2066
  %2348 = vmatpush1.msra.mxu0 %v2065
  %2349 = vmatprep.subr.mxu0 %v2068
  %2350 = vmatpush1.msra.mxu0 %v2067
  %2351 = vmatprep.subr.mxu0 %v2070
  %2352 = vmatpush1.msra.mxu0 %v2069
  %2353 = vmatprep.subr.mxu0 %v2072
  %2354 = vmatpush1.msra.mxu0 %v2071
  %2355 = vmatprep.subr.mxu0 %v2074
  %2356 = vmatpush1.msra.mxu0 %v2073
  %2357 = vmatprep.subr.mxu0 %v2076
  %2358 = vmatpush1.msra.mxu0 %v2075
  %2359 = vmatprep.subr.mxu0 %v2078
  %2360 = vmatpush1.msra.mxu0 %v2077
  %2361 = vmatprep.subr.mxu0 %v2080
  %2362 = vmatpush1.msra.mxu0 %v2079
  %2363 = vmatprep.subr.mxu0 %v2082
  %2364 = vmatpush1.msra.mxu0 %v2081
  %2365 = vmatprep.mubr.f32.mxu0 %v1888
  %2366 = vmatmul.mubr.f32.gmra.mrb[0].mxu0 %v1887
  %v2367 = vpop.f32.mrb[0].mxu0
  %v2368 = vadd.f32 %v2297, %v2367
  %v2369 = vpop.f32.mrb[0].mxu0
  %v2370 = vadd.f32 %v2299, %v2369
  %2371 = vdwg.mxu0
  %2372 = vmatprep.subr.mxu0 %v2084
  %2373 = vmatpush1.msra.mxu0 %v2083
  %2374 = vmatprep.subr.mxu0 %v2086
  %2375 = vmatpush1.msra.mxu0 %v2085
  %2376 = vmatprep.subr.mxu0 %v2088
  %2377 = vmatpush1.msra.mxu0 %v2087
  %2378 = vmatprep.subr.mxu0 %v2090
  %2379 = vmatpush1.msra.mxu0 %v2089
  %2380 = vmatprep.subr.mxu0 %v2092
  %2381 = vmatpush1.msra.mxu0 %v2091
  %2382 = vmatprep.subr.mxu0 %v2094
  %2383 = vmatpush1.msra.mxu0 %v2093
  %2384 = vmatprep.subr.mxu0 %v2096
  %2385 = vmatpush1.msra.mxu0 %v2095
  %2386 = vmatprep.subr.mxu0 %v2098
  %2387 = vmatpush1.msra.mxu0 %v2097
  %2388 = vmatprep.subr.mxu0 %v2100
  %2389 = vmatpush1.msra.mxu0 %v2099
  %2390 = vmatprep.subr.mxu0 %v2102
  %2391 = vmatpush1.msra.mxu0 %v2101
  %2392 = vmatprep.subr.mxu0 %v2104
  %2393 = vmatpush1.msra.mxu0 %v2103
  %2394 = vmatprep.subr.mxu0 %v2106
  %2395 = vmatpush1.msra.mxu0 %v2105
  %2396 = vmatprep.subr.mxu0 %v2108
  %2397 = vmatpush1.msra.mxu0 %v2107
  %2398 = vmatprep.subr.mxu0 %v2110
  %2399 = vmatpush1.msra.mxu0 %v2109
  %2400 = vmatprep.subr.mxu0 %v2112
  %2401 = vmatpush1.msra.mxu0 %v2111
  %2402 = vmatprep.subr.mxu0 %v2114
  %2403 = vmatpush1.msra.mxu0 %v2113
  %2404 = vmatprep.subr.mxu0 %v2116
  %2405 = vmatpush1.msra.mxu0 %v2115
  %2406 = vmatprep.subr.mxu0 %v2118
  %2407 = vmatpush1.msra.mxu0 %v2117
  %2408 = vmatprep.subr.mxu0 %v2120
  %2409 = vmatpush1.msra.mxu0 %v2119
  %2410 = vmatprep.subr.mxu0 %v2122
  %2411 = vmatpush1.msra.mxu0 %v2121
  %2412 = vmatprep.subr.mxu0 %v2124
  %2413 = vmatpush1.msra.mxu0 %v2123
  %2414 = vmatprep.subr.mxu0 %v2126
  %2415 = vmatpush1.msra.mxu0 %v2125
  %2416 = vmatprep.subr.mxu0 %v2128
  %2417 = vmatpush1.msra.mxu0 %v2127
  %2418 = vmatprep.subr.mxu0 %v2130
  %2419 = vmatpush1.msra.mxu0 %v2129
  %2420 = vmatprep.subr.mxu0 %v2132
  %2421 = vmatpush1.msra.mxu0 %v2131
  %2422 = vmatprep.subr.mxu0 %v2134
  %2423 = vmatpush1.msra.mxu0 %v2133
  %2424 = vmatprep.subr.mxu0 %v2136
  %2425 = vmatpush1.msra.mxu0 %v2135
  %2426 = vmatprep.subr.mxu0 %v2138
  %2427 = vmatpush1.msra.mxu0 %v2137
  %2428 = vmatprep.subr.mxu0 %v2140
  %2429 = vmatpush1.msra.mxu0 %v2139
  %2430 = vmatprep.subr.mxu0 %v2142
  %2431 = vmatpush1.msra.mxu0 %v2141
  %2432 = vmatprep.subr.mxu0 %v2144
  %2433 = vmatpush1.msra.mxu0 %v2143
  %2434 = vmatprep.subr.mxu0 %v2146
  %2435 = vmatpush1.msra.mxu0 %v2145
  %2436 = vmatprep.mubr.f32.mxu0 %v1890
  %2437 = vmatmul.mubr.f32.gmra.mrb[0].mxu0 %v1889
  %v2438 = vpop.f32.mrb[0].mxu0
  %v2439 = vadd.f32 %v2368, %v2438
  %v2440 = vpop.f32.mrb[0].mxu0
  %v2441 = vadd.f32 %v2370, %v2440
  %2442 = vdwg.mxu0
  %v2443 = vmul.f32 %v2439, 0.5
  %v2444 = vmul.f32 %v2441, 0.5
  %v2445 = vmul.f32 %v2439, 0.70710677
  %v2446 = vmul.f32 %v2441, 0.70710677
  %v2447 = verf.f32.pop %v2445
  %v2448 = verf.f32.pop %v2446
  %v2449 = vadd.f32 %v2447, 1.0
  %v2450 = vadd.f32 %v2448, 1.0
  %v2451 = vmul.f32 %v2443, %v2449
  %v2452 = vmul.f32 %v2444, %v2450
  %2453 = vst [vmem:[%s7] sm:$0xff] %v2451
  %2454 = vst [vmem:[%s7 + $0x8] sm:$0xff] %v2452
  // Predicated region
  $region30: #{dann_forward.1} parent=0 // pred_check
    _
  $region31: #{dann_forward.1} parent=0 // pred_check_branch
    %2456 = sbr.rel (0) target = $region33
  $region32: #{dann_forward.1} parent=0 // pred_region
    _
  $region33: #{dann_forward.1} parent=0 // pred_fallthru
    _
  // Predicated region
  $region34: #{dann_forward.1} parent=0 // pred_check
    _
  $region35: #{dann_forward.1} parent=0 // pred_check_branch
    %2458 = sbr.rel (0) target = $region37
  $region36: #{dann_forward.1} parent=0 // pred_region
    _
  $region37: #{dann_forward.1} parent=0 // pred_fallthru
    _

</llo_original>
